<compile_context>
chip_gen: v6e
topology: v6e:2x2x1
jax: 0.10.0
libtpu: 0.0.40
codegen_flags: <defaults>
</compile_context>

<pallas_src>
import functools
import math

import jax
import jax.numpy as jnp
from jax.experimental import pallas as pl
from jax.experimental.pallas import tpu as pltpu

EPS = 1e-5                       # torch.nn.LayerNorm default
VMEM_LIMIT = 32 * 1024 * 1024    # explicit scoped-VMEM budget (safe on v5e/v6e/v7x)
_SQRT_2_OVER_PI = math.sqrt(2.0 / math.pi)


def _round_up(a, m):
    return ((a + m - 1) // m) * m


def _ln(x, g, b):
    mu = jnp.mean(x, axis=-1, keepdims=True)
    var = jnp.mean(jnp.square(x - mu), axis=-1, keepdims=True)
    return (x - mu) * jax.lax.rsqrt(var + EPS) * g + b


def _gelu_tanh(x):
    # tanh-approx GELU -> transcendental goes to the EUP slot (perf review).
    return 0.5 * x * (1.0 + jnp.tanh(_SQRT_2_OVER_PI * (x + 0.044715 * x * x * x)))


def _bf16(x):
    return x.astype(jnp.bfloat16)


# ---------------------------------------------------------------------------
# Kernel: Linear(C_i -> dim) + LayerNorm            (PyramidSqueeze hot path)
# Tiled over rows; bf16 MXU operands, f32 accumulation and LN stats.
# ---------------------------------------------------------------------------
def _squeeze_kernel(x_ref, w_ref, b_ref, g_ref, beta_ref, o_ref):
    y = jnp.dot(_bf16(x_ref[...]), w_ref[...],
                preferred_element_type=jnp.float32) + b_ref[...]
    o_ref[...] = _ln(y, g_ref[...], beta_ref[...])


def pallas_squeeze_proj(x, w, b, g, beta, *, tile_m=512):
    M, C = x.shape
    N = w.shape[1]
    tm = min(tile_m, _round_up(M, 8))
    Mp = _round_up(M, tm)
    xp = jnp.pad(x, ((0, Mp - M), (0, 0))) if Mp != M else x
    out = pl.pallas_call(
        _squeeze_kernel,
        out_shape=jax.ShapeDtypeStruct((Mp, N), jnp.float32),
        grid=(Mp // tm,),
        in_specs=[
            pl.BlockSpec((tm, C), lambda i: (i, 0)),
            pl.BlockSpec((C, N), lambda i: (0, 0)),
            pl.BlockSpec((1, N), lambda i: (0, 0)),
            pl.BlockSpec((1, N), lambda i: (0, 0)),
            pl.BlockSpec((1, N), lambda i: (0, 0)),
        ],
        out_specs=pl.BlockSpec((tm, N), lambda i: (i, 0)),
        compiler_params=pltpu.CompilerParams(
            dimension_semantics=("parallel",), vmem_limit_bytes=VMEM_LIMIT),
    )(xp, w, b, g, beta)
    return out[:M] if Mp != M else out


# ---------------------------------------------------------------------------
# Kernel: LayerNorm + Linear(dim -> C_i)            (PyramidReverse hot path)
# ---------------------------------------------------------------------------
def _reverse_kernel(x_ref, g_ref, beta_ref, w_ref, b_ref, o_ref):
    y = _ln(x_ref[...], g_ref[...], beta_ref[...])
    o_ref[...] = jnp.dot(_bf16(y), w_ref[...],
                         preferred_element_type=jnp.float32) + b_ref[...]


def pallas_reverse_proj(x, g, beta, w, b, *, tile_m=512):
    M, D = x.shape
    N = w.shape[1]
    tm = min(tile_m, _round_up(M, 8))
    Mp = _round_up(M, tm)
    xp = jnp.pad(x, ((0, Mp - M), (0, 0))) if Mp != M else x
    out = pl.pallas_call(
        _reverse_kernel,
        out_shape=jax.ShapeDtypeStruct((Mp, N), jnp.float32),
        grid=(Mp // tm,),
        in_specs=[
            pl.BlockSpec((tm, D), lambda i: (i, 0)),
            pl.BlockSpec((1, D), lambda i: (0, 0)),
            pl.BlockSpec((1, D), lambda i: (0, 0)),
            pl.BlockSpec((D, N), lambda i: (0, 0)),
            pl.BlockSpec((1, N), lambda i: (0, 0)),
        ],
        out_specs=pl.BlockSpec((tm, N), lambda i: (i, 0)),
        compiler_params=pltpu.CompilerParams(
            dimension_semantics=("parallel",), vmem_limit_bytes=VMEM_LIMIT),
    )(xp, g, beta, w, b)
    return out[:M] if Mp != M else out


# ---------------------------------------------------------------------------
# Kernel: fused pre-norm transformer block (MHA [+ rel-scale bias] + MLP).
# One grid step processes Nb independent sequences.  Dense projections run
# on the flattened (Nb*Sp, D) token matrix; heads are merged into the output
# projection (no concat).  Token axis is padded to a sublane multiple and
# padded keys are masked with -1e9.
# ---------------------------------------------------------------------------
def _attn_block_kernel(x_ref, ln1g, ln1b, wqkv, bqkv, wproj, bproj,
                       ln2g, ln2b, w1, b1, w2, b2, *rest,
                       num_heads, has_bias, valid_len):
    if has_bias:
        bias_ref, o_ref = rest
    else:
        (o_ref,) = rest
        bias_ref = None

    xb = x_ref[...]                                   # (Nb, Sp, D) f32
    Nb, Sp, D = xb.shape
    dh = D // num_heads
    scale = 1.0 / math.sqrt(dh)

    xt = xb.reshape(Nb * Sp, D)                       # token-flattened residual stream

    # ---------------- multi-head self-attention (pre-norm) ----------------
    y = _ln(xt, ln1g[...], ln1b[...])
    qkv = jnp.dot(_bf16(y), wqkv[...],
                  preferred_element_type=jnp.float32) + bqkv[...]    # (Nb*Sp, 3D)
    qkv3 = qkv.reshape(Nb, Sp, 3 * D)

    wp = wproj[...]                                   # (D, D) bf16
    bias_all = bias_ref[...] if has_bias else None
    if valid_len < Sp:
        kidx = jax.lax.broadcasted_iota(jnp.int32, (1, 1, Sp), 2)
        key_mask = jnp.where(kidx < valid_len, 0.0, -1e9).astype(jnp.float32)
    else:
        key_mask = None

    attn = jnp.zeros((Nb * Sp, D), jnp.float32)
    for h in range(num_heads):
        qh = _bf16(qkv3[:, :, h * dh:(h + 1) * dh])
        kh = _bf16(qkv3[:, :, D + h * dh:D + (h + 1) * dh])
        vh = _bf16(qkv3[:, :, 2 * D + h * dh:2 * D + (h + 1) * dh])
        s = jnp.einsum('bqd,bkd->bqk', qh, kh,
                       preferred_element_type=jnp.float32) * scale   # (Nb, Sp, Sp)
        if has_bias:
            s = s + bias_all[h]
        if key_mask is not None:
            s = s + key_mask
        s = s - jnp.max(s, axis=-1, keepdims=True)
        p = jnp.exp(s)
        p = p * pl.reciprocal(jnp.sum(p, axis=-1, keepdims=True), approx=True)
        ao = jnp.einsum('bqk,bkd->bqd', _bf16(p), vh,
                        preferred_element_type=jnp.float32)          # (Nb, Sp, dh)
        # head-merge fused into the output projection (no concat / relayout):
        attn = attn + jnp.dot(_bf16(ao.reshape(Nb * Sp, dh)),
                              wp[h * dh:(h + 1) * dh, :],
                              preferred_element_type=jnp.float32)
    xt = xt + attn + bproj[...]

    # ---------------- MLP ----------------
    y2 = _ln(xt, ln2g[...], ln2b[...])
    hmid = _gelu_tanh(jnp.dot(_bf16(y2), w1[...],
                              preferred_element_type=jnp.float32) + b1[...])
    mlp = jnp.dot(_bf16(hmid), w2[...],
                  preferred_element_type=jnp.float32) + b2[...]
    o_ref[...] = (xt + mlp).reshape(Nb, Sp, D)


def pallas_transformer_block(x, p, bias, num_heads, *, vmem_budget=5 << 20):
    """Fused pre-norm transformer block over N independent length-S sequences."""
    N, S, D = x.shape
    hid = p["w1"].shape[1]
    has_bias = bias is not None

    # Pad the token axis to a sublane multiple; padded keys are masked in-kernel.
    Sp = _round_up(S, 8)
    if Sp != S:
        x = jnp.pad(x, ((0, 0), (0, Sp - S), (0, 0)))
        if has_bias:
            bias = jnp.pad(bias, ((0, 0), (0, Sp - S), (0, Sp - S)))

    # Sequences per grid step from a rough VMEM byte budget (f32+bf16 intermediates).
    per_seq = Sp * (max(3 * D, hid) * 6 + Sp * 10)
    Nb = int(max(1, min(N, 256, vmem_budget // per_seq)))
    Np = _round_up(N, Nb)
    if Np != N:
        x = jnp.pad(x, ((0, Np - N), (0, 0), (0, 0)))

    def rep(a):
        nd = a.ndim
        return pl.BlockSpec(a.shape, lambda n: (0,) * nd)

    inputs = [x, p["ln1_g"], p["ln1_b"], p["wqkv"], p["bqkv"], p["wproj"], p["bproj"],
              p["ln2_g"], p["ln2_b"], p["w1"], p["b1"], p["w2"], p["b2"]]
    in_specs = [pl.BlockSpec((Nb, Sp, D), lambda n: (n, 0, 0))] + [rep(a) for a in inputs[1:]]
    if has_bias:
        inputs.append(bias)
        in_specs.append(rep(bias))

    kern = functools.partial(_attn_block_kernel, num_heads=num_heads,
                             has_bias=has_bias, valid_len=S)
    out = pl.pallas_call(
        kern,
        out_shape=jax.ShapeDtypeStruct((Np, Sp, D), jnp.float32),
        grid=(Np // Nb,),
        in_specs=in_specs,
        out_specs=pl.BlockSpec((Nb, Sp, D), lambda n: (n, 0, 0)),
        compiler_params=pltpu.CompilerParams(
            dimension_semantics=("parallel",), vmem_limit_bytes=VMEM_LIMIT),
    )(*inputs)
    if Np != N or Sp != S:
        out = out[:N, :S]
    return out


# ---------------------------------------------------------------------------
# Kernel: depthwise conv over the window grid (LSPE), NHWC, pre-padded input,
# batched over NB window-grid images per grid step.
# ---------------------------------------------------------------------------
def _dwconv_kernel(x_ref, w_ref, b_ref, o_ref, *, k, Hg, Wg):
    x = x_ref[...]                        # (NB, Hg+k-1, Wg+k-1, D)
    w = w_ref[...]                        # (k, k, D)
    NB = x.shape[0]
    D = x.shape[-1]
    acc = jnp.zeros((NB, Hg, Wg, D), jnp.float32)
    for di in range(k):
        for dj in range(k):
            acc = acc + x[:, di:di + Hg, dj:dj + Wg, :] * w[di, dj]
    o_ref[...] = acc + b_ref[...]


def pallas_lspe(x_grid, w, b, k):
    Bs, Hg, Wg, D = x_grid.shape
    pad = (k - 1) // 2
    # TODO(synk): halo padding could be folded into the kernel to skip this HBM pass.
    xp = jnp.pad(x_grid, ((0, 0), (pad, pad), (pad, pad), (0, 0)))
    Hp, Wp = Hg + 2 * pad, Wg + 2 * pad
    per_img = Hp * Wp * D * 4
    NB = int(max(1, min(Bs, 128, (2 << 20) // per_img)))
    Bsp = _round_up(Bs, NB)
    if Bsp != Bs:
        xp = jnp.pad(xp, ((0, Bsp - Bs), (0, 0), (0, 0), (0, 0)))
    kern = functools.partial(_dwconv_kernel, k=k, Hg=Hg, Wg=Wg)
    out = pl.pallas_call(
        kern,
        out_shape=jax.ShapeDtypeStruct((Bsp, Hg, Wg, D), jnp.float32),
        grid=(Bsp // NB,),
        in_specs=[
            pl.BlockSpec((NB, Hp, Wp, D), lambda i: (i, 0, 0, 0)),
            pl.BlockSpec((k, k, D), lambda i: (0, 0, 0)),
            pl.BlockSpec((1, D), lambda i: (0, 0)),
        ],
        out_specs=pl.BlockSpec((NB, Hg, Wg, D), lambda i: (i, 0, 0, 0)),
        compiler_params=pltpu.CompilerParams(
            dimension_semantics=("parallel",), vmem_limit_bytes=VMEM_LIMIT),
    )(xp, w, b)
    return out[:Bs] if Bsp != Bs else out


# ---------------------------------------------------------------------------
# Module
# ---------------------------------------------------------------------------
class ScaleUnifiedAttentionPallas:
    def __init__(self, dims_of_layers, dim=64, num_heads=16, base_window_size=1,
                 mlp_ratio=8, lspe_k_size=7, use_rsb=True, use_lspe=True, key=None):
        L = len(dims_of_layers)
        assert dim % num_heads == 0
        self.dims = list(dims_of_layers)
        self.dim = dim
        self.num_heads = num_heads
        self.size = [base_window_size * 2 ** (L - 1 - i) for i in range(L)]
        self.square_size = [s * s for s in self.size]
        self.S = sum(self.square_size)
        self.use_rsb = use_rsb
        self.use_lspe = use_lspe
        self.lspe_k = lspe_k_size
        hid = int(dim * mlp_ratio)

        key = jax.random.PRNGKey(0) if key is None else key
        ks = iter(jax.random.split(key, 64))

        def nrm(shape, std=0.02, dtype=jnp.float32):
            return (std * jax.random.normal(next(ks), shape, jnp.float32)).astype(dtype)

        bf = jnp.bfloat16  # matmul weights stored in bf16 (f32 accumulation in-kernel)
        self.squeeze = [dict(w=nrm((c, dim), dtype=bf), b=jnp.zeros((1, dim), jnp.float32),
                             g=jnp.ones((1, dim), jnp.float32),
                             beta=jnp.zeros((1, dim), jnp.float32))
                        for c in self.dims]
        self.reverse = [dict(g=jnp.ones((1, dim), jnp.float32),
                             beta=jnp.zeros((1, dim), jnp.float32),
                             w=nrm((dim, c), dtype=bf), b=jnp.zeros((1, c), jnp.float32))
                        for c in self.dims]

        def block_params():
            return dict(
                ln1_g=jnp.ones((1, dim), jnp.float32), ln1_b=jnp.zeros((1, dim), jnp.float32),
                wqkv=nrm((dim, 3 * dim), dtype=bf), bqkv=jnp.zeros((1, 3 * dim), jnp.float32),
                wproj=nrm((dim, dim), dtype=bf), bproj=jnp.zeros((1, dim), jnp.float32),
                ln2_g=jnp.ones((1, dim), jnp.float32), ln2_b=jnp.zeros((1, dim), jnp.float32),
                w1=nrm((dim, hid), dtype=bf), b1=jnp.zeros((1, hid), jnp.float32),
                w2=nrm((hid, dim), dtype=bf), b2=jnp.zeros((1, dim), jnp.float32))

        self.lsa = block_params()
        self.gsa = block_params()
        self.rsb = nrm((num_heads, self.S, self.S)) if use_rsb else None
        self.lspe_w = nrm((lspe_k_size, lspe_k_size, dim),
                          std=math.sqrt(2.0 / (lspe_k_size * lspe_k_size * dim)))
        self.lspe_b = jnp.zeros((1, dim), jnp.float32)

    def __call__(self, multi_layer_features):
        feats = list(multi_layer_features)
        L = len(feats)
        sizes_orig = [f.shape for f in feats]
        num_wh = math.ceil(feats[-1].shape[-2] / float(self.size[-1]))
        num_ww = math.ceil(feats[-1].shape[-1] / float(self.size[-1]))

        padded = []
        for i in range(L):
            bp = num_wh * self.size[i] - feats[i].shape[-2]
            rp = num_ww * self.size[i] - feats[i].shape[-1]
            padded.append(jnp.pad(feats[i], ((0, 0), (0, 0), (0, bp), (0, rp))))

        B = padded[0].shape[0]
        nW = num_wh * num_ww
        D = self.dim

        # ---- PyramidSqueeze (window partition + Linear + LayerNorm) ----
        tokens = []
        for i in range(L):
            w = self.size[i]
            x = padded[i]
            C = x.shape[1]
            x = jnp.transpose(x, (0, 2, 3, 1))
            x = x.reshape(B, num_wh, w, num_ww, w, C)
            x = jnp.transpose(x, (0, 1, 3, 2, 4, 5)).reshape(B * nW * w * w, C)
            p = self.squeeze[i]
            y = pallas_squeeze_proj(x, p["w"], p["b"], p["g"], p["beta"])
            tokens.append(y.reshape(B * nW, w * w, D))
        x = jnp.concatenate(tokens, axis=1)          # (B*nW, S, D)

        # ---- LSA: attention over the S scale tokens of each window column ----
        x = pallas_transformer_block(x, self.lsa,
                                     self.rsb if self.use_rsb else None, self.num_heads)

        # ---- GSA: attention over the window grid per (batch, scale token) ----
        S = self.S
        xg = x.reshape(B, nW, S, D).transpose(0, 2, 1, 3).reshape(B * S, nW, D)
        if self.use_lspe:
            grid_img = xg.reshape(B * S, num_wh, num_ww, D)
            pe = pallas_lspe(grid_img, self.lspe_w, self.lspe_b, self.lspe_k)
            xg = xg + pe.reshape(B * S, nW, D)
        # spatial_mask is None -> no bias tensor DMA'd / added (static flag).
        xg = pallas_transformer_block(xg, self.gsa, None, self.num_heads)
        x = xg.reshape(B, S, nW, D).transpose(0, 2, 1, 3).reshape(B * nW, S, D)

        # ---- split per scale + PyramidReverse + gating + crop ----
        outs = []
        offset = 0
        for i in range(L):
            w = self.size[i]
            sq = self.square_size[i]
            xi = x[:, offset:offset + sq, :].reshape(B * nW * sq, D)
            offset += sq
            p = self.reverse[i]
            y = pallas_reverse_proj(xi, p["g"], p["beta"], p["w"], p["b"])
            C = self.dims[i]
            y = y.reshape(B, num_wh, num_ww, w, w, C)
            y = jnp.transpose(y, (0, 5, 1, 3, 2, 4)).reshape(B, C, num_wh * w, num_ww * w)
            # feat + drop_path(rev * feat): trivial elementwise -> left to XLA fusion.
            out = padded[i] + y * padded[i]
            out = out[:, :, :sizes_orig[i][-2], :sizes_orig[i][-1]]
            outs.append(out)
        return outs


if __name__ == "__main__":
    key = jax.random.PRNGKey(0)
    k1, k2, k3, kp = jax.random.split(key, 4)
    dims_of_layers = [8, 16, 32]
    feats = [
        jax.random.normal(k1, (2, 8, 15, 15), jnp.float32),
        jax.random.normal(k2, (2, 16, 8, 8), jnp.float32),
        jax.random.normal(k3, (2, 32, 4, 4), jnp.float32),
    ]
    mod = ScaleUnifiedAttentionPallas(dims_of_layers, dim=32, num_heads=4,
                                      base_window_size=1, mlp_ratio=4,
                                      lspe_k_size=3, key=kp)
    outs = mod(feats)
    for o in outs:
        jax.block_until_ready(o)
    assert [tuple(o.shape) for o in outs] == [tuple(f.shape) for f in feats]
    assert all(bool(jnp.all(jnp.isfinite(o))) for o in outs)
    print("KERNEL_OK")
</pallas_src>

<mosaic_0001>
module attributes {stable_mosaic.version = 11 : i64} {
  func.func @_squeeze_kernel(%arg0: i32, %arg1: memref<512x8xf32, #tpu.memory_space<vmem>>, %arg2: memref<8x32xbf16, #tpu.memory_space<vmem>>, %arg3: memref<1x32xf32, #tpu.memory_space<vmem>>, %arg4: memref<1x32xf32, #tpu.memory_space<vmem>>, %arg5: memref<1x32xf32, #tpu.memory_space<vmem>>, %arg6: memref<512x32xf32, #tpu.memory_space<vmem>>) attributes {dimension_semantics = [#tpu.dimension_semantics<parallel>], iteration_bounds = array<i64: 1>, scalar_prefetch = 0 : i64, scratch_operands = 0 : i64, tpu.core_type = #tpu.core_type<tc>, window_params = [{transform_indices = @transform_0, window_bounds = array<i64: 512, 8>}, {pipeline_mode = #tpu.pipeline_mode<synchronous>, transform_indices = @transform_1, window_bounds = array<i64: 8, 32>}, {pipeline_mode = #tpu.pipeline_mode<synchronous>, transform_indices = @transform_2, window_bounds = array<i64: 1, 32>}, {pipeline_mode = #tpu.pipeline_mode<synchronous>, transform_indices = @transform_3, window_bounds = array<i64: 1, 32>}, {pipeline_mode = #tpu.pipeline_mode<synchronous>, transform_indices = @transform_4, window_bounds = array<i64: 1, 32>}, {transform_indices = @transform_5, window_bounds = array<i64: 512, 32>}]} {
    %c0 = arith.constant 0 : index
    %c0_0 = arith.constant 0 : index
    %0 = vector.load %arg1[%c0, %c0_0] : memref<512x8xf32, #tpu.memory_space<vmem>>, vector<512x8xf32>
    %1 = arith.truncf %0 : vector<512x8xf32> to vector<512x8xbf16>
    %c0_1 = arith.constant 0 : index
    %c0_2 = arith.constant 0 : index
    %2 = vector.load %arg2[%c0_1, %c0_2] : memref<8x32xbf16, #tpu.memory_space<vmem>>, vector<8x32xbf16>
    %cst = arith.constant dense<0.000000e+00> : vector<512x32xf32>
    %3 = tpu.matmul %1, %2, %cst {dimension_numbers = #tpu.dot_dimension_numbers<[1], [0], [0], [1], [0, 0, 1, 1], [], []>} : vector<512x8xbf16>, vector<8x32xbf16>, vector<512x32xf32> -> vector<512x32xf32>
    %c0_3 = arith.constant 0 : index
    %c0_4 = arith.constant 0 : index
    %4 = vector.load %arg3[%c0_3, %c0_4] : memref<1x32xf32, #tpu.memory_space<vmem>>, vector<1x32xf32>
    %5 = vector.broadcast %4 : vector<1x32xf32> to vector<512x32xf32>
    %6 = arith.addf %3, %5 : vector<512x32xf32>
    %c0_5 = arith.constant 0 : index
    %c0_6 = arith.constant 0 : index
    %7 = vector.load %arg4[%c0_5, %c0_6] : memref<1x32xf32, #tpu.memory_space<vmem>>, vector<1x32xf32>
    %c0_7 = arith.constant 0 : index
    %c0_8 = arith.constant 0 : index
    %8 = vector.load %arg5[%c0_7, %c0_8] : memref<1x32xf32, #tpu.memory_space<vmem>>, vector<1x32xf32>
    %cst_9 = arith.constant dense<0.000000e+00> : vector<512xf32>
    %9 = vector.multi_reduction <add>, %6, %cst_9 [1] : vector<512x32xf32> to vector<512xf32>
    %10 = vector.shape_cast %9 : vector<512xf32> to vector<512x1xf32>
    %cst_10 = arith.constant 3.200000e+01 : f32
    %11 = vector.broadcast %cst_10 : f32 to vector<512x1xf32>
    %12 = arith.divf %10, %11 : vector<512x1xf32>
    %13 = vector.broadcast %12 : vector<512x1xf32> to vector<512x32xf32>
    %14 = arith.subf %6, %13 : vector<512x32xf32>
    %15 = arith.mulf %14, %14 : vector<512x32xf32>
    %cst_11 = arith.constant dense<0.000000e+00> : vector<512xf32>
    %16 = vector.multi_reduction <add>, %15, %cst_11 [1] : vector<512x32xf32> to vector<512xf32>
    %17 = vector.shape_cast %16 : vector<512xf32> to vector<512x1xf32>
    %cst_12 = arith.constant 3.200000e+01 : f32
    %18 = vector.broadcast %cst_12 : f32 to vector<512x1xf32>
    %19 = arith.divf %17, %18 : vector<512x1xf32>
    %20 = vector.broadcast %12 : vector<512x1xf32> to vector<512x32xf32>
    %21 = arith.subf %6, %20 : vector<512x32xf32>
    %cst_13 = arith.constant 9.99999974E-6 : f32
    %22 = vector.broadcast %cst_13 : f32 to vector<512x1xf32>
    %23 = arith.addf %19, %22 : vector<512x1xf32>
    %24 = math.rsqrt %23 : vector<512x1xf32>
    %25 = vector.broadcast %24 : vector<512x1xf32> to vector<512x32xf32>
    %26 = arith.mulf %21, %25 : vector<512x32xf32>
    %27 = vector.broadcast %7 : vector<1x32xf32> to vector<512x32xf32>
    %28 = arith.mulf %26, %27 : vector<512x32xf32>
    %29 = vector.broadcast %8 : vector<1x32xf32> to vector<512x32xf32>
    %30 = arith.addf %28, %29 : vector<512x32xf32>
    %c0_14 = arith.constant 0 : index
    %c0_15 = arith.constant 0 : index
    %31 = vector.load %arg6[%c0_14, %c0_15] : memref<512x32xf32, #tpu.memory_space<vmem>>, vector<512x32xf32>
    tpu.vector_store %arg6[%c0_14, %c0_15], %30 {strides = array<i32>} : memref<512x32xf32, #tpu.memory_space<vmem>>, vector<512x32xf32>,
    return
  }
  func.func @transform_0(%arg0: i32) -> (i32, i32) {
    %c0_i32 = arith.constant 0 : i32
    %c0_i32_0 = arith.constant 0 : i32
    return %arg0, %c0_i32 : i32, i32
  }
  func.func @transform_1(%arg0: i32) -> (i32, i32) {
    %c0_i32 = arith.constant 0 : i32
    %c0_i32_0 = arith.constant 0 : i32
    %c0_i32_1 = arith.constant 0 : i32
    return %c0_i32, %c0_i32_0 : i32, i32
  }
  func.func @transform_2(%arg0: i32) -> (i32, i32) {
    %c0_i32 = arith.constant 0 : i32
    %c0_i32_0 = arith.constant 0 : i32
    %c0_i32_1 = arith.constant 0 : i32
    return %c0_i32, %c0_i32_0 : i32, i32
  }
  func.func @transform_3(%arg0: i32) -> (i32, i32) {
    %c0_i32 = arith.constant 0 : i32
    %c0_i32_0 = arith.constant 0 : i32
    %c0_i32_1 = arith.constant 0 : i32
    return %c0_i32, %c0_i32_0 : i32, i32
  }
  func.func @transform_4(%arg0: i32) -> (i32, i32) {
    %c0_i32 = arith.constant 0 : i32
    %c0_i32_0 = arith.constant 0 : i32
    %c0_i32_1 = arith.constant 0 : i32
    return %c0_i32, %c0_i32_0 : i32, i32
  }
  func.func @transform_5(%arg0: i32) -> (i32, i32) {
    %c0_i32 = arith.constant 0 : i32
    %c0_i32_0 = arith.constant 0 : i32
    return %arg0, %c0_i32 : i32, i32
  }
}

</mosaic_0001>

<llo_original>
// kernel: tpu_custom_call.1
$region0: #{tpu_custom_call.1}
  #allocation0 [shape = 'u32[]', space=smem, size = 0x4, offset = 0x4, fixed_abs, tag = 'smem constant byte address 0x4 - core index']
  #allocation1 [shape = 'u32[144,128]{1,0:T(1,128)}', space=vmem, size = 0x12000, scoped, tag = 'internal scratch']
  %s0 = inlined_call_operand.vmem [shape: f32[512,8], index: 0, kind: input, shape index: {}]
  %s1 = inlined_call_operand.vmem [shape: bf16[8,32], index: 1, kind: input, shape index: {}]
  %s2 = inlined_call_operand.vmem [shape: f32[1,32], index: 2, kind: input, shape index: {}]
  %s3 = inlined_call_operand.vmem [shape: f32[1,32], index: 3, kind: input, shape index: {}]
  %s4 = inlined_call_operand.vmem [shape: f32[1,32], index: 4, kind: input, shape index: {}]
  %s5 = inlined_call_operand.vmem [shape: f32[512,32], index: 5, kind: output, shape index: {}]
  %s6 = sld [smem:[#allocation0]]
  $region30: #{tpu_custom_call.1} parent=0
    _
  %s8 = ssub.s32 1, %s6
  %s9 = scalar_select 0, %s8, %s6
  // Predicated region
  $region2: #{tpu_custom_call.1} parent=0 // pred_check
    _
  $region3: #{tpu_custom_call.1} parent=0 // pred_check_branch
    %11 = sbr.rel (0) target = $region5
  $region4: #{tpu_custom_call.1} parent=0 // pred_region
    _
  $region5: #{tpu_custom_call.1} parent=0 // pred_fallthru
    _
  // Predicated region
  $region6: #{tpu_custom_call.1} parent=0 // pred_check
    _
  $region7: #{tpu_custom_call.1} parent=0 // pred_check_branch
    %13 = sbr.rel (0) target = $region9
  $region8: #{tpu_custom_call.1} parent=0 // pred_region
    _
  $region9: #{tpu_custom_call.1} parent=0 // pred_fallthru
    _
  // Predicated region
  $region10: #{tpu_custom_call.1} parent=0 // pred_check
    _
  $region11: #{tpu_custom_call.1} parent=0 // pred_check_branch
    %15 = sbr.rel (0) target = $region13
  $region12: #{tpu_custom_call.1} parent=0 // pred_region
    _
  $region13: #{tpu_custom_call.1} parent=0 // pred_fallthru
    _
  // Predicated region
  $region14: #{tpu_custom_call.1} parent=0 // pred_check
    _
  $region15: #{tpu_custom_call.1} parent=0 // pred_check_branch
    %17 = sbr.rel (0) target = $region17
  $region16: #{tpu_custom_call.1} parent=0 // pred_region
    _
  $region17: #{tpu_custom_call.1} parent=0 // pred_fallthru
    _
  // Predicated region
  $region18: #{tpu_custom_call.1} parent=0 // pred_check
    _
  $region19: #{tpu_custom_call.1} parent=0 // pred_check_branch
    %19 = sbr.rel (0) target = $region21
  $region20: #{tpu_custom_call.1} parent=0 // pred_region
    _
  $region21: #{tpu_custom_call.1} parent=0 // pred_fallthru
    _
  %v21 = vld [vmem:[%s0] sm:$0xff]
  %v22 = vld [vmem:[%s0 + $0x8] sm:$0xff]
  %v23 = vld [vmem:[%s0 + $0x10] sm:$0xff]
  %v24 = vld [vmem:[%s0 + $0x18] sm:$0xff]
  %v25 = vld [vmem:[%s0 + $0x20] sm:$0xff]
  %v26 = vld [vmem:[%s0 + $0x28] sm:$0xff]
  %v27 = vld [vmem:[%s0 + $0x30] sm:$0xff]
  %v28 = vld [vmem:[%s0 + $0x38] sm:$0xff]
  %v29 = vld [vmem:[%s0 + $0x40] sm:$0xff]
  %v30 = vld [vmem:[%s0 + $0x48] sm:$0xff]
  %v31 = vld [vmem:[%s0 + $0x50] sm:$0xff]
  %v32 = vld [vmem:[%s0 + $0x58] sm:$0xff]
  %v33 = vld [vmem:[%s0 + $0x60] sm:$0xff]
  %v34 = vld [vmem:[%s0 + $0x68] sm:$0xff]
  %v35 = vld [vmem:[%s0 + $0x70] sm:$0xff]
  %v36 = vld [vmem:[%s0 + $0x78] sm:$0xff]
  %v37 = vld [vmem:[%s0 + $0x80] sm:$0xff]
  %v38 = vld [vmem:[%s0 + $0x88] sm:$0xff]
  %v39 = vld [vmem:[%s0 + $0x90] sm:$0xff]
  %v40 = vld [vmem:[%s0 + $0x98] sm:$0xff]
  %v41 = vld [vmem:[%s0 + $0xa0] sm:$0xff]
  %v42 = vld [vmem:[%s0 + $0xa8] sm:$0xff]
  %v43 = vld [vmem:[%s0 + $0xb0] sm:$0xff]
  %v44 = vld [vmem:[%s0 + $0xb8] sm:$0xff]
  %v45 = vld [vmem:[%s0 + $0xc0] sm:$0xff]
  %v46 = vld [vmem:[%s0 + $0xc8] sm:$0xff]
  %v47 = vld [vmem:[%s0 + $0xd0] sm:$0xff]
  %v48 = vld [vmem:[%s0 + $0xd8] sm:$0xff]
  %v49 = vld [vmem:[%s0 + $0xe0] sm:$0xff]
  %v50 = vld [vmem:[%s0 + $0xe8] sm:$0xff]
  %v51 = vld [vmem:[%s0 + $0xf0] sm:$0xff]
  %v52 = vld [vmem:[%s0 + $0xf8] sm:$0xff]
  %v53 = vld [vmem:[%s0 + $0x100] sm:$0xff]
  %v54 = vld [vmem:[%s0 + $0x108] sm:$0xff]
  %v55 = vld [vmem:[%s0 + $0x110] sm:$0xff]
  %v56 = vld [vmem:[%s0 + $0x118] sm:$0xff]
  %v57 = vld [vmem:[%s0 + $0x120] sm:$0xff]
  %v58 = vld [vmem:[%s0 + $0x128] sm:$0xff]
  %v59 = vld [vmem:[%s0 + $0x130] sm:$0xff]
  %v60 = vld [vmem:[%s0 + $0x138] sm:$0xff]
  %v61 = vld [vmem:[%s0 + $0x140] sm:$0xff]
  %v62 = vld [vmem:[%s0 + $0x148] sm:$0xff]
  %v63 = vld [vmem:[%s0 + $0x150] sm:$0xff]
  %v64 = vld [vmem:[%s0 + $0x158] sm:$0xff]
  %v65 = vld [vmem:[%s0 + $0x160] sm:$0xff]
  %v66 = vld [vmem:[%s0 + $0x168] sm:$0xff]
  %v67 = vld [vmem:[%s0 + $0x170] sm:$0xff]
  %v68 = vld [vmem:[%s0 + $0x178] sm:$0xff]
  %v69 = vld [vmem:[%s0 + $0x180] sm:$0xff]
  %v70 = vld [vmem:[%s0 + $0x188] sm:$0xff]
  %v71 = vld [vmem:[%s0 + $0x190] sm:$0xff]
  %v72 = vld [vmem:[%s0 + $0x198] sm:$0xff]
  %v73 = vld [vmem:[%s0 + $0x1a0] sm:$0xff]
  %v74 = vld [vmem:[%s0 + $0x1a8] sm:$0xff]
  %v75 = vld [vmem:[%s0 + $0x1b0] sm:$0xff]
  %v76 = vld [vmem:[%s0 + $0x1b8] sm:$0xff]
  %v77 = vld [vmem:[%s0 + $0x1c0] sm:$0xff]
  %v78 = vld [vmem:[%s0 + $0x1c8] sm:$0xff]
  %v79 = vld [vmem:[%s0 + $0x1d0] sm:$0xff]
  %v80 = vld [vmem:[%s0 + $0x1d8] sm:$0xff]
  %v81 = vld [vmem:[%s0 + $0x1e0] sm:$0xff]
  %v82 = vld [vmem:[%s0 + $0x1e8] sm:$0xff]
  %v83 = vld [vmem:[%s0 + $0x1f0] sm:$0xff]
  %v84 = vld [vmem:[%s0 + $0x1f8] sm:$0xff]
  %v85 = vpack.c.bf16 %v22, %v21
  %v86 = vpack.c.bf16 %v24, %v23
  %v87 = vpack.c.bf16 %v26, %v25
  %v88 = vpack.c.bf16 %v28, %v27
  %v89 = vpack.c.bf16 %v30, %v29
  %v90 = vpack.c.bf16 %v32, %v31
  %v91 = vpack.c.bf16 %v34, %v33
  %v92 = vpack.c.bf16 %v36, %v35
  %v93 = vpack.c.bf16 %v38, %v37
  %v94 = vpack.c.bf16 %v40, %v39
  %v95 = vpack.c.bf16 %v42, %v41
  %v96 = vpack.c.bf16 %v44, %v43
  %v97 = vpack.c.bf16 %v46, %v45
  %v98 = vpack.c.bf16 %v48, %v47
  %v99 = vpack.c.bf16 %v50, %v49
  %v100 = vpack.c.bf16 %v52, %v51
  %v101 = vpack.c.bf16 %v54, %v53
  %v102 = vpack.c.bf16 %v56, %v55
  %v103 = vpack.c.bf16 %v58, %v57
  %v104 = vpack.c.bf16 %v60, %v59
  %v105 = vpack.c.bf16 %v62, %v61
  %v106 = vpack.c.bf16 %v64, %v63
  %v107 = vpack.c.bf16 %v66, %v65
  %v108 = vpack.c.bf16 %v68, %v67
  %v109 = vpack.c.bf16 %v70, %v69
  %v110 = vpack.c.bf16 %v72, %v71
  %v111 = vpack.c.bf16 %v74, %v73
  %v112 = vpack.c.bf16 %v76, %v75
  %v113 = vpack.c.bf16 %v78, %v77
  %v114 = vpack.c.bf16 %v80, %v79
  %v115 = vpack.c.bf16 %v82, %v81
  %v116 = vpack.c.bf16 %v84, %v83
  %v117 = vld [vmem:[%s1] sm:$0xf]
  %v118 = vld [vmem:[%s2] sm:$0x1]
  %v120 = vlaneseq
  %v121 = vshrl.u32 %v120, 7
  %v122 = vsub.s32 0, %v121
  %v123 = vrot.slane %v118, %v122
  %vm125 = vcmask 64512
  %v127 = vsel %vm125, %v85, 0
  %v130 = vsel %vm125, %v86, 0
  %v133 = vsel %vm125, %v87, 0
  %v136 = vsel %vm125, %v88, 0
  %v139 = vsel %vm125, %v89, 0
  %v142 = vsel %vm125, %v90, 0
  %v145 = vsel %vm125, %v91, 0
  %v148 = vsel %vm125, %v92, 0
  %v151 = vsel %vm125, %v93, 0
  %v154 = vsel %vm125, %v94, 0
  %v157 = vsel %vm125, %v95, 0
  %v160 = vsel %vm125, %v96, 0
  %v163 = vsel %vm125, %v97, 0
  %v166 = vsel %vm125, %v98, 0
  %v169 = vsel %vm125, %v99, 0
  %v172 = vsel %vm125, %v100, 0
  %v175 = vsel %vm125, %v101, 0
  %v178 = vsel %vm125, %v102, 0
  %v181 = vsel %vm125, %v103, 0
  %v184 = vsel %vm125, %v104, 0
  %v187 = vsel %vm125, %v105, 0
  %v190 = vsel %vm125, %v106, 0
  %v193 = vsel %vm125, %v107, 0
  %v196 = vsel %vm125, %v108, 0
  %v199 = vsel %vm125, %v109, 0
  %v202 = vsel %vm125, %v110, 0
  %v205 = vsel %vm125, %v111, 0
  %v208 = vsel %vm125, %v112, 0
  %v211 = vsel %vm125, %v113, 0
  %v214 = vsel %vm125, %v114, 0
  %v217 = vsel %vm125, %v115, 0
  %v220 = vsel %vm125, %v116, 0
  %vm222 = vcmask 1043456
  %v224 = vsel %vm222, %v117, 0
  %226 = vmatprep.subr.bf16.mxu0 0
  %227 = vmatpush1.bf16.msra.mxu0 0
  %228 = vmatprep.subr.bf16.mxu0 0
  %229 = vmatpush1.bf16.msra.mxu0 0
  %230 = vmatprep.subr.bf16.mxu0 0
  %231 = vmatpush1.bf16.msra.mxu0 0
  %232 = vmatprep.subr.bf16.mxu0 0
  %233 = vmatpush1.bf16.msra.mxu0 0
  %234 = vmatprep.subr.bf16.mxu0 0
  %235 = vmatpush1.bf16.msra.mxu0 0
  %236 = vmatprep.subr.bf16.mxu0 0
  %237 = vmatpush1.bf16.msra.mxu0 0
  %238 = vmatprep.subr.bf16.mxu0 0
  %239 = vmatpush1.bf16.msra.mxu0 0
  %240 = vmatprep.subr.bf16.mxu0 0
  %241 = vmatpush1.bf16.msra.mxu0 %v224
  %242 = vmatprep.subr.bf16.mxu0 0
  %243 = vmatpush2.bf16.msra.mxu0 0
  %244 = vmatprep.subr.bf16.mxu0 0
  %245 = vmatpush2.bf16.msra.mxu0 0
  %246 = vmatprep.subr.bf16.mxu0 0
  %247 = vmatpush2.bf16.msra.mxu0 0
  %248 = vmatprep.subr.bf16.mxu0 0
  %249 = vmatpush2.bf16.msra.mxu0 0
  %250 = vmatprep.subr.bf16.mxu0 0
  %251 = vmatpush2.bf16.msra.mxu0 0
  %252 = vmatprep.subr.bf16.mxu0 0
  %253 = vmatpush2.bf16.msra.mxu0 0
  %254 = vmatprep.subr.bf16.mxu0 0
  %255 = vmatpush2.bf16.msra.mxu0 0
  %256 = vmatprep.subr.bf16.mxu0 0
  %257 = vmatpush2.bf16.msra.mxu0 0
  %258 = vmatprep.mubr.bf16.mxu0 0
  %259 = vmatmul.mubr.bf16.gmra.mxu0 %v127
  %v260 = vpop.f32.mrf.mxu0
  %v261 = vadd.f32 %v123, %v260
  %v262 = vpop.f32.mrf.mxu0
  %v263 = vpop.f32.mrf.mxu0
  %v264 = vadd.f32 %v123, %v263
  %v265 = vpop.f32.mrf.mxu0
  %266 = vmatprep.mubr.bf16.mxu0 0
  %267 = vmatmul.mubr.bf16.gmra.mxu0 %v130
  %v268 = vpop.f32.mrf.mxu0
  %v269 = vadd.f32 %v123, %v268
  %v270 = vpop.f32.mrf.mxu0
  %v271 = vpop.f32.mrf.mxu0
  %v272 = vadd.f32 %v123, %v271
  %v273 = vpop.f32.mrf.mxu0
  %274 = vmatprep.mubr.bf16.mxu0 0
  %275 = vmatmul.mubr.bf16.gmra.mxu0 %v133
  %v276 = vpop.f32.mrf.mxu0
  %v277 = vadd.f32 %v123, %v276
  %v278 = vpop.f32.mrf.mxu0
  %v279 = vpop.f32.mrf.mxu0
  %v280 = vadd.f32 %v123, %v279
  %v281 = vpop.f32.mrf.mxu0
  %282 = vmatprep.mubr.bf16.mxu0 0
  %283 = vmatmul.mubr.bf16.gmra.mxu0 %v136
  %v284 = vpop.f32.mrf.mxu0
  %v285 = vadd.f32 %v123, %v284
  %v286 = vpop.f32.mrf.mxu0
  %v287 = vpop.f32.mrf.mxu0
  %v288 = vadd.f32 %v123, %v287
  %v289 = vpop.f32.mrf.mxu0
  %290 = vmatprep.mubr.bf16.mxu0 0
  %291 = vmatmul.mubr.bf16.gmra.mxu0 %v139
  %v292 = vpop.f32.mrf.mxu0
  %v293 = vadd.f32 %v123, %v292
  %v294 = vpop.f32.mrf.mxu0
  %v295 = vpop.f32.mrf.mxu0
  %v296 = vadd.f32 %v123, %v295
  %v297 = vpop.f32.mrf.mxu0
  %298 = vmatprep.mubr.bf16.mxu0 0
  %299 = vmatmul.mubr.bf16.gmra.mxu0 %v142
  %v300 = vpop.f32.mrf.mxu0
  %v301 = vadd.f32 %v123, %v300
  %v302 = vpop.f32.mrf.mxu0
  %v303 = vpop.f32.mrf.mxu0
  %v304 = vadd.f32 %v123, %v303
  %v305 = vpop.f32.mrf.mxu0
  %306 = vmatprep.mubr.bf16.mxu0 0
  %307 = vmatmul.mubr.bf16.gmra.mxu0 %v145
  %v308 = vpop.f32.mrf.mxu0
  %v309 = vadd.f32 %v123, %v308
  %v310 = vpop.f32.mrf.mxu0
  %v311 = vpop.f32.mrf.mxu0
  %v312 = vadd.f32 %v123, %v311
  %v313 = vpop.f32.mrf.mxu0
  %314 = vmatprep.mubr.bf16.mxu0 0
  %315 = vmatmul.mubr.bf16.gmra.mxu0 %v148
  %v316 = vpop.f32.mrf.mxu0
  %v317 = vadd.f32 %v123, %v316
  %v318 = vpop.f32.mrf.mxu0
  %v319 = vpop.f32.mrf.mxu0
  %v320 = vadd.f32 %v123, %v319
  %v321 = vpop.f32.mrf.mxu0
  %322 = vmatprep.mubr.bf16.mxu0 0
  %323 = vmatmul.mubr.bf16.gmra.mxu0 %v151
  %v324 = vpop.f32.mrf.mxu0
  %v325 = vadd.f32 %v123, %v324
  %v326 = vpop.f32.mrf.mxu0
  %v327 = vpop.f32.mrf.mxu0
  %v328 = vadd.f32 %v123, %v327
  %v329 = vpop.f32.mrf.mxu0
  %330 = vmatprep.mubr.bf16.mxu0 0
  %331 = vmatmul.mubr.bf16.gmra.mxu0 %v154
  %v332 = vpop.f32.mrf.mxu0
  %v333 = vadd.f32 %v123, %v332
  %v334 = vpop.f32.mrf.mxu0
  %v335 = vpop.f32.mrf.mxu0
  %v336 = vadd.f32 %v123, %v335
  %v337 = vpop.f32.mrf.mxu0
  %338 = vmatprep.mubr.bf16.mxu0 0
  %339 = vmatmul.mubr.bf16.gmra.mxu0 %v157
  %v340 = vpop.f32.mrf.mxu0
  %v341 = vadd.f32 %v123, %v340
  %v342 = vpop.f32.mrf.mxu0
  %v343 = vpop.f32.mrf.mxu0
  %v344 = vadd.f32 %v123, %v343
  %v345 = vpop.f32.mrf.mxu0
  %346 = vmatprep.mubr.bf16.mxu0 0
  %347 = vmatmul.mubr.bf16.gmra.mxu0 %v160
  %v348 = vpop.f32.mrf.mxu0
  %v349 = vadd.f32 %v123, %v348
  %v350 = vpop.f32.mrf.mxu0
  %v351 = vpop.f32.mrf.mxu0
  %v352 = vadd.f32 %v123, %v351
  %v353 = vpop.f32.mrf.mxu0
  %354 = vmatprep.mubr.bf16.mxu0 0
  %355 = vmatmul.mubr.bf16.gmra.mxu0 %v163
  %v356 = vpop.f32.mrf.mxu0
  %v357 = vadd.f32 %v123, %v356
  %v358 = vpop.f32.mrf.mxu0
  %v359 = vpop.f32.mrf.mxu0
  %v360 = vadd.f32 %v123, %v359
  %v361 = vpop.f32.mrf.mxu0
  %362 = vmatprep.mubr.bf16.mxu0 0
  %363 = vmatmul.mubr.bf16.gmra.mxu0 %v166
  %v364 = vpop.f32.mrf.mxu0
  %v365 = vadd.f32 %v123, %v364
  %v366 = vpop.f32.mrf.mxu0
  %v367 = vpop.f32.mrf.mxu0
  %v368 = vadd.f32 %v123, %v367
  %v369 = vpop.f32.mrf.mxu0
  %370 = vmatprep.mubr.bf16.mxu0 0
  %371 = vmatmul.mubr.bf16.gmra.mxu0 %v169
  %v372 = vpop.f32.mrf.mxu0
  %v373 = vadd.f32 %v123, %v372
  %v374 = vpop.f32.mrf.mxu0
  %v375 = vpop.f32.mrf.mxu0
  %v376 = vadd.f32 %v123, %v375
  %v377 = vpop.f32.mrf.mxu0
  %378 = vmatprep.mubr.bf16.mxu0 0
  %379 = vmatmul.mubr.bf16.gmra.mxu0 %v172
  %v380 = vpop.f32.mrf.mxu0
  %v381 = vadd.f32 %v123, %v380
  %v382 = vpop.f32.mrf.mxu0
  %v383 = vpop.f32.mrf.mxu0
  %v384 = vadd.f32 %v123, %v383
  %v385 = vpop.f32.mrf.mxu0
  %386 = vmatprep.mubr.bf16.mxu0 0
  %387 = vmatmul.mubr.bf16.gmra.mxu0 %v175
  %v388 = vpop.f32.mrf.mxu0
  %v389 = vadd.f32 %v123, %v388
  %v390 = vpop.f32.mrf.mxu0
  %v391 = vpop.f32.mrf.mxu0
  %v392 = vadd.f32 %v123, %v391
  %v393 = vpop.f32.mrf.mxu0
  %394 = vmatprep.mubr.bf16.mxu0 0
  %395 = vmatmul.mubr.bf16.gmra.mxu0 %v178
  %v396 = vpop.f32.mrf.mxu0
  %v397 = vadd.f32 %v123, %v396
  %v398 = vpop.f32.mrf.mxu0
  %v399 = vpop.f32.mrf.mxu0
  %v400 = vadd.f32 %v123, %v399
  %v401 = vpop.f32.mrf.mxu0
  %402 = vmatprep.mubr.bf16.mxu0 0
  %403 = vmatmul.mubr.bf16.gmra.mxu0 %v181
  %v404 = vpop.f32.mrf.mxu0
  %v405 = vadd.f32 %v123, %v404
  %v406 = vpop.f32.mrf.mxu0
  %v407 = vpop.f32.mrf.mxu0
  %v408 = vadd.f32 %v123, %v407
  %v409 = vpop.f32.mrf.mxu0
  %410 = vmatprep.mubr.bf16.mxu0 0
  %411 = vmatmul.mubr.bf16.gmra.mxu0 %v184
  %v412 = vpop.f32.mrf.mxu0
  %v413 = vadd.f32 %v123, %v412
  %v414 = vpop.f32.mrf.mxu0
  %v415 = vpop.f32.mrf.mxu0
  %v416 = vadd.f32 %v123, %v415
  %v417 = vpop.f32.mrf.mxu0
  %418 = vmatprep.mubr.bf16.mxu0 0
  %419 = vmatmul.mubr.bf16.gmra.mxu0 %v187
  %v420 = vpop.f32.mrf.mxu0
  %v421 = vadd.f32 %v123, %v420
  %v422 = vpop.f32.mrf.mxu0
  %v423 = vpop.f32.mrf.mxu0
  %v424 = vadd.f32 %v123, %v423
  %v425 = vpop.f32.mrf.mxu0
  %426 = vmatprep.mubr.bf16.mxu0 0
  %427 = vmatmul.mubr.bf16.gmra.mxu0 %v190
  %v428 = vpop.f32.mrf.mxu0
  %v429 = vadd.f32 %v123, %v428
  %v430 = vpop.f32.mrf.mxu0
  %v431 = vpop.f32.mrf.mxu0
  %v432 = vadd.f32 %v123, %v431
  %v433 = vpop.f32.mrf.mxu0
  %434 = vmatprep.mubr.bf16.mxu0 0
  %435 = vmatmul.mubr.bf16.gmra.mxu0 %v193
  %v436 = vpop.f32.mrf.mxu0
  %v437 = vadd.f32 %v123, %v436
  %v438 = vpop.f32.mrf.mxu0
  %v439 = vpop.f32.mrf.mxu0
  %v440 = vadd.f32 %v123, %v439
  %v441 = vpop.f32.mrf.mxu0
  %442 = vmatprep.mubr.bf16.mxu0 0
  %443 = vmatmul.mubr.bf16.gmra.mxu0 %v196
  %v444 = vpop.f32.mrf.mxu0
  %v445 = vadd.f32 %v123, %v444
  %v446 = vpop.f32.mrf.mxu0
  %v447 = vpop.f32.mrf.mxu0
  %v448 = vadd.f32 %v123, %v447
  %v449 = vpop.f32.mrf.mxu0
  %450 = vmatprep.mubr.bf16.mxu0 0
  %451 = vmatmul.mubr.bf16.gmra.mxu0 %v199
  %v452 = vpop.f32.mrf.mxu0
  %v453 = vadd.f32 %v123, %v452
  %v454 = vpop.f32.mrf.mxu0
  %v455 = vpop.f32.mrf.mxu0
  %v456 = vadd.f32 %v123, %v455
  %v457 = vpop.f32.mrf.mxu0
  %458 = vmatprep.mubr.bf16.mxu0 0
  %459 = vmatmul.mubr.bf16.gmra.mxu0 %v202
  %v460 = vpop.f32.mrf.mxu0
  %v461 = vadd.f32 %v123, %v460
  %v462 = vpop.f32.mrf.mxu0
  %v463 = vpop.f32.mrf.mxu0
  %v464 = vadd.f32 %v123, %v463
  %v465 = vpop.f32.mrf.mxu0
  %466 = vmatprep.mubr.bf16.mxu0 0
  %467 = vmatmul.mubr.bf16.gmra.mxu0 %v205
  %v468 = vpop.f32.mrf.mxu0
  %v469 = vadd.f32 %v123, %v468
  %v470 = vpop.f32.mrf.mxu0
  %v471 = vpop.f32.mrf.mxu0
  %v472 = vadd.f32 %v123, %v471
  %v473 = vpop.f32.mrf.mxu0
  %474 = vmatprep.mubr.bf16.mxu0 0
  %475 = vmatmul.mubr.bf16.gmra.mxu0 %v208
  %v476 = vpop.f32.mrf.mxu0
  %v477 = vadd.f32 %v123, %v476
  %v478 = vpop.f32.mrf.mxu0
  %v479 = vpop.f32.mrf.mxu0
  %v480 = vadd.f32 %v123, %v479
  %v481 = vpop.f32.mrf.mxu0
  %482 = vmatprep.mubr.bf16.mxu0 0
  %483 = vmatmul.mubr.bf16.gmra.mxu0 %v211
  %v484 = vpop.f32.mrf.mxu0
  %v485 = vadd.f32 %v123, %v484
  %v486 = vpop.f32.mrf.mxu0
  %v487 = vpop.f32.mrf.mxu0
  %v488 = vadd.f32 %v123, %v487
  %v489 = vpop.f32.mrf.mxu0
  %490 = vmatprep.mubr.bf16.mxu0 0
  %491 = vmatmul.mubr.bf16.gmra.mxu0 %v214
  %v492 = vpop.f32.mrf.mxu0
  %v493 = vadd.f32 %v123, %v492
  %v494 = vpop.f32.mrf.mxu0
  %v495 = vpop.f32.mrf.mxu0
  %v496 = vadd.f32 %v123, %v495
  %v497 = vpop.f32.mrf.mxu0
  %498 = vmatprep.mubr.bf16.mxu0 0
  %499 = vmatmul.mubr.bf16.gmra.mxu0 %v217
  %v500 = vpop.f32.mrf.mxu0
  %v501 = vadd.f32 %v123, %v500
  %v502 = vpop.f32.mrf.mxu0
  %v503 = vpop.f32.mrf.mxu0
  %v504 = vadd.f32 %v123, %v503
  %v505 = vpop.f32.mrf.mxu0
  %506 = vmatprep.mubr.bf16.mxu0 0
  %507 = vmatmul.mubr.bf16.gmra.mxu0 %v220
  %v508 = vpop.f32.mrf.mxu0
  %v509 = vadd.f32 %v123, %v508
  %v510 = vpop.f32.mrf.mxu0
  %v511 = vpop.f32.mrf.mxu0
  %v512 = vadd.f32 %v123, %v511
  %v513 = vpop.f32.mrf.mxu0
  %514 = vdwg.mxu0
  %v515 = vld [vmem:[%s3] sm:$0x1]
  %v516 = vld [vmem:[%s4] sm:$0x1]
  %vm517 = vcmask 261120
  %v518 = vsel %vm517, %v261, 0.0
  %519 = vadd.xlane.f32.xlu0 %v518
  %v520 = vpop.xlane.xlu0 %519
  %v521 = vsel %vm517, %v264, 0.0
  %522 = vadd.xlane.f32.xlu0 %v521
  %v523 = vpop.xlane.xlu0 %522
  %v524 = vsel %vm517, %v269, 0.0
  %525 = vadd.xlane.f32.xlu0 %v524
  %v526 = vpop.xlane.xlu0 %525
  %v527 = vsel %vm517, %v272, 0.0
  %528 = vadd.xlane.f32.xlu0 %v527
  %v529 = vpop.xlane.xlu0 %528
  %v530 = vsel %vm517, %v277, 0.0
  %531 = vadd.xlane.f32.xlu0 %v530
  %v532 = vpop.xlane.xlu0 %531
  %v533 = vsel %vm517, %v280, 0.0
  %534 = vadd.xlane.f32.xlu0 %v533
  %v535 = vpop.xlane.xlu0 %534
  %v536 = vsel %vm517, %v285, 0.0
  %537 = vadd.xlane.f32.xlu0 %v536
  %v538 = vpop.xlane.xlu0 %537
  %v539 = vsel %vm517, %v288, 0.0
  %540 = vadd.xlane.f32.xlu0 %v539
  %v541 = vpop.xlane.xlu0 %540
  %v542 = vsel %vm517, %v293, 0.0
  %543 = vadd.xlane.f32.xlu0 %v542
  %v544 = vpop.xlane.xlu0 %543
  %v545 = vsel %vm517, %v296, 0.0
  %546 = vadd.xlane.f32.xlu0 %v545
  %v547 = vpop.xlane.xlu0 %546
  %v548 = vsel %vm517, %v301, 0.0
  %549 = vadd.xlane.f32.xlu0 %v548
  %v550 = vpop.xlane.xlu0 %549
  %v551 = vsel %vm517, %v304, 0.0
  %552 = vadd.xlane.f32.xlu0 %v551
  %v553 = vpop.xlane.xlu0 %552
  %v554 = vsel %vm517, %v309, 0.0
  %555 = vadd.xlane.f32.xlu0 %v554
  %v556 = vpop.xlane.xlu0 %555
  %v557 = vsel %vm517, %v312, 0.0
  %558 = vadd.xlane.f32.xlu0 %v557
  %v559 = vpop.xlane.xlu0 %558
  %v560 = vsel %vm517, %v317, 0.0
  %561 = vadd.xlane.f32.xlu0 %v560
  %v562 = vpop.xlane.xlu0 %561
  %v563 = vsel %vm517, %v320, 0.0
  %564 = vadd.xlane.f32.xlu0 %v563
  %v565 = vpop.xlane.xlu0 %564
  %v566 = vsel %vm517, %v325, 0.0
  %567 = vadd.xlane.f32.xlu0 %v566
  %v568 = vpop.xlane.xlu0 %567
  %v569 = vsel %vm517, %v328, 0.0
  %570 = vadd.xlane.f32.xlu0 %v569
  %v571 = vpop.xlane.xlu0 %570
  %v572 = vsel %vm517, %v333, 0.0
  %573 = vadd.xlane.f32.xlu0 %v572
  %v574 = vpop.xlane.xlu0 %573
  %v575 = vsel %vm517, %v336, 0.0
  %576 = vadd.xlane.f32.xlu0 %v575
  %v577 = vpop.xlane.xlu0 %576
  %v578 = vsel %vm517, %v341, 0.0
  %579 = vadd.xlane.f32.xlu0 %v578
  %v580 = vpop.xlane.xlu0 %579
  %v581 = vsel %vm517, %v344, 0.0
  %582 = vadd.xlane.f32.xlu0 %v581
  %v583 = vpop.xlane.xlu0 %582
  %v584 = vsel %vm517, %v349, 0.0
  %585 = vadd.xlane.f32.xlu0 %v584
  %v586 = vpop.xlane.xlu0 %585
  %v587 = vsel %vm517, %v352, 0.0
  %588 = vadd.xlane.f32.xlu0 %v587
  %v589 = vpop.xlane.xlu0 %588
  %v590 = vsel %vm517, %v357, 0.0
  %591 = vadd.xlane.f32.xlu0 %v590
  %v592 = vpop.xlane.xlu0 %591
  %v593 = vsel %vm517, %v360, 0.0
  %594 = vadd.xlane.f32.xlu0 %v593
  %v595 = vpop.xlane.xlu0 %594
  %v596 = vsel %vm517, %v365, 0.0
  %597 = vadd.xlane.f32.xlu0 %v596
  %v598 = vpop.xlane.xlu0 %597
  %v599 = vsel %vm517, %v368, 0.0
  %600 = vadd.xlane.f32.xlu0 %v599
  %v601 = vpop.xlane.xlu0 %600
  %v602 = vsel %vm517, %v373, 0.0
  %603 = vadd.xlane.f32.xlu0 %v602
  %v604 = vpop.xlane.xlu0 %603
  %v605 = vsel %vm517, %v376, 0.0
  %606 = vadd.xlane.f32.xlu0 %v605
  %v607 = vpop.xlane.xlu0 %606
  %v608 = vsel %vm517, %v381, 0.0
  %609 = vadd.xlane.f32.xlu0 %v608
  %v610 = vpop.xlane.xlu0 %609
  %v611 = vsel %vm517, %v384, 0.0
  %612 = vadd.xlane.f32.xlu0 %v611
  %v613 = vpop.xlane.xlu0 %612
  %v614 = vsel %vm517, %v389, 0.0
  %615 = vadd.xlane.f32.xlu0 %v614
  %v616 = vpop.xlane.xlu0 %615
  %v617 = vsel %vm517, %v392, 0.0
  %618 = vadd.xlane.f32.xlu0 %v617
  %v619 = vpop.xlane.xlu0 %618
  %v620 = vsel %vm517, %v397, 0.0
  %621 = vadd.xlane.f32.xlu0 %v620
  %v622 = vpop.xlane.xlu0 %621
  %v623 = vsel %vm517, %v400, 0.0
  %624 = vadd.xlane.f32.xlu0 %v623
  %v625 = vpop.xlane.xlu0 %624
  %v626 = vsel %vm517, %v405, 0.0
  %627 = vadd.xlane.f32.xlu0 %v626
  %v628 = vpop.xlane.xlu0 %627
  %v629 = vsel %vm517, %v408, 0.0
  %630 = vadd.xlane.f32.xlu0 %v629
  %v631 = vpop.xlane.xlu0 %630
  %v632 = vsel %vm517, %v413, 0.0
  %633 = vadd.xlane.f32.xlu0 %v632
  %v634 = vpop.xlane.xlu0 %633
  %v635 = vsel %vm517, %v416, 0.0
  %636 = vadd.xlane.f32.xlu0 %v635
  %v637 = vpop.xlane.xlu0 %636
  %v638 = vsel %vm517, %v421, 0.0
  %639 = vadd.xlane.f32.xlu0 %v638
  %v640 = vpop.xlane.xlu0 %639
  %v641 = vsel %vm517, %v424, 0.0
  %642 = vadd.xlane.f32.xlu0 %v641
  %v643 = vpop.xlane.xlu0 %642
  %v644 = vsel %vm517, %v429, 0.0
  %645 = vadd.xlane.f32.xlu0 %v644
  %v646 = vpop.xlane.xlu0 %645
  %v647 = vsel %vm517, %v432, 0.0
  %648 = vadd.xlane.f32.xlu0 %v647
  %v649 = vpop.xlane.xlu0 %648
  %v650 = vsel %vm517, %v437, 0.0
  %651 = vadd.xlane.f32.xlu0 %v650
  %v652 = vpop.xlane.xlu0 %651
  %v653 = vsel %vm517, %v440, 0.0
  %654 = vadd.xlane.f32.xlu0 %v653
  %v655 = vpop.xlane.xlu0 %654
  %v656 = vsel %vm517, %v445, 0.0
  %657 = vadd.xlane.f32.xlu0 %v656
  %v658 = vpop.xlane.xlu0 %657
  %v659 = vsel %vm517, %v448, 0.0
  %660 = vadd.xlane.f32.xlu0 %v659
  %v661 = vpop.xlane.xlu0 %660
  %v662 = vsel %vm517, %v453, 0.0
  %663 = vadd.xlane.f32.xlu0 %v662
  %v664 = vpop.xlane.xlu0 %663
  %v665 = vsel %vm517, %v456, 0.0
  %666 = vadd.xlane.f32.xlu0 %v665
  %v667 = vpop.xlane.xlu0 %666
  %v668 = vsel %vm517, %v461, 0.0
  %669 = vadd.xlane.f32.xlu0 %v668
  %v670 = vpop.xlane.xlu0 %669
  %v671 = vsel %vm517, %v464, 0.0
  %672 = vadd.xlane.f32.xlu0 %v671
  %v673 = vpop.xlane.xlu0 %672
  %v674 = vsel %vm517, %v469, 0.0
  %675 = vadd.xlane.f32.xlu0 %v674
  %v676 = vpop.xlane.xlu0 %675
  %v677 = vsel %vm517, %v472, 0.0
  %678 = vadd.xlane.f32.xlu0 %v677
  %v679 = vpop.xlane.xlu0 %678
  %v680 = vsel %vm517, %v477, 0.0
  %681 = vadd.xlane.f32.xlu0 %v680
  %v682 = vpop.xlane.xlu0 %681
  %v683 = vsel %vm517, %v480, 0.0
  %684 = vadd.xlane.f32.xlu0 %v683
  %v685 = vpop.xlane.xlu0 %684
  %v686 = vsel %vm517, %v485, 0.0
  %687 = vadd.xlane.f32.xlu0 %v686
  %v688 = vpop.xlane.xlu0 %687
  %v689 = vsel %vm517, %v488, 0.0
  %690 = vadd.xlane.f32.xlu0 %v689
  %v691 = vpop.xlane.xlu0 %690
  %v692 = vsel %vm517, %v493, 0.0
  %693 = vadd.xlane.f32.xlu0 %v692
  %v694 = vpop.xlane.xlu0 %693
  %v695 = vsel %vm517, %v496, 0.0
  %696 = vadd.xlane.f32.xlu0 %v695
  %v697 = vpop.xlane.xlu0 %696
  %v698 = vsel %vm517, %v501, 0.0
  %699 = vadd.xlane.f32.xlu0 %v698
  %v700 = vpop.xlane.xlu0 %699
  %v701 = vsel %vm517, %v504, 0.0
  %702 = vadd.xlane.f32.xlu0 %v701
  %v703 = vpop.xlane.xlu0 %702
  %v704 = vsel %vm517, %v509, 0.0
  %705 = vadd.xlane.f32.xlu0 %v704
  %v706 = vpop.xlane.xlu0 %705
  %v707 = vsel %vm517, %v512, 0.0
  %708 = vadd.xlane.f32.xlu0 %v707
  %v709 = vpop.xlane.xlu0 %708
  %v710 = vrcp.pop 32.0
  %v711 = vmul.f32 %v520, %v710
  %v712 = vmul.f32 %v523, %v710
  %v713 = vmul.f32 %v526, %v710
  %v714 = vmul.f32 %v529, %v710
  %v715 = vmul.f32 %v532, %v710
  %v716 = vmul.f32 %v535, %v710
  %v717 = vmul.f32 %v538, %v710
  %v718 = vmul.f32 %v541, %v710
  %v719 = vmul.f32 %v544, %v710
  %v720 = vmul.f32 %v547, %v710
  %v721 = vmul.f32 %v550, %v710
  %v722 = vmul.f32 %v553, %v710
  %v723 = vmul.f32 %v556, %v710
  %v724 = vmul.f32 %v559, %v710
  %v725 = vmul.f32 %v562, %v710
  %v726 = vmul.f32 %v565, %v710
  %v727 = vmul.f32 %v568, %v710
  %v728 = vmul.f32 %v571, %v710
  %v729 = vmul.f32 %v574, %v710
  %v730 = vmul.f32 %v577, %v710
  %v731 = vmul.f32 %v580, %v710
  %v732 = vmul.f32 %v583, %v710
  %v733 = vmul.f32 %v586, %v710
  %v734 = vmul.f32 %v589, %v710
  %v735 = vmul.f32 %v592, %v710
  %v736 = vmul.f32 %v595, %v710
  %v737 = vmul.f32 %v598, %v710
  %v738 = vmul.f32 %v601, %v710
  %v739 = vmul.f32 %v604, %v710
  %v740 = vmul.f32 %v607, %v710
  %v741 = vmul.f32 %v610, %v710
  %v742 = vmul.f32 %v613, %v710
  %v743 = vmul.f32 %v616, %v710
  %v744 = vmul.f32 %v619, %v710
  %v745 = vmul.f32 %v622, %v710
  %v746 = vmul.f32 %v625, %v710
  %v747 = vmul.f32 %v628, %v710
  %v748 = vmul.f32 %v631, %v710
  %v749 = vmul.f32 %v634, %v710
  %v750 = vmul.f32 %v637, %v710
  %v751 = vmul.f32 %v640, %v710
  %v752 = vmul.f32 %v643, %v710
  %v753 = vmul.f32 %v646, %v710
  %v754 = vmul.f32 %v649, %v710
  %v755 = vmul.f32 %v652, %v710
  %v756 = vmul.f32 %v655, %v710
  %v757 = vmul.f32 %v658, %v710
  %v758 = vmul.f32 %v661, %v710
  %v759 = vmul.f32 %v664, %v710
  %v760 = vmul.f32 %v667, %v710
  %v761 = vmul.f32 %v670, %v710
  %v762 = vmul.f32 %v673, %v710
  %v763 = vmul.f32 %v676, %v710
  %v764 = vmul.f32 %v679, %v710
  %v765 = vmul.f32 %v682, %v710
  %v766 = vmul.f32 %v685, %v710
  %v767 = vmul.f32 %v688, %v710
  %v768 = vmul.f32 %v691, %v710
  %v769 = vmul.f32 %v694, %v710
  %v770 = vmul.f32 %v697, %v710
  %v771 = vmul.f32 %v700, %v710
  %v772 = vmul.f32 %v703, %v710
  %v773 = vmul.f32 %v706, %v710
  %v774 = vmul.f32 %v709, %v710
  %v775 = vsub.f32 %v261, %v711
  %v776 = vsub.f32 %v264, %v712
  %v777 = vsub.f32 %v269, %v713
  %v778 = vsub.f32 %v272, %v714
  %v779 = vsub.f32 %v277, %v715
  %v780 = vsub.f32 %v280, %v716
  %v781 = vsub.f32 %v285, %v717
  %v782 = vsub.f32 %v288, %v718
  %v783 = vsub.f32 %v293, %v719
  %v784 = vsub.f32 %v296, %v720
  %v785 = vsub.f32 %v301, %v721
  %v786 = vsub.f32 %v304, %v722
  %v787 = vsub.f32 %v309, %v723
  %v788 = vsub.f32 %v312, %v724
  %v789 = vsub.f32 %v317, %v725
  %v790 = vsub.f32 %v320, %v726
  %v791 = vsub.f32 %v325, %v727
  %v792 = vsub.f32 %v328, %v728
  %v793 = vsub.f32 %v333, %v729
  %v794 = vsub.f32 %v336, %v730
  %v795 = vsub.f32 %v341, %v731
  %v796 = vsub.f32 %v344, %v732
  %v797 = vsub.f32 %v349, %v733
  %v798 = vsub.f32 %v352, %v734
  %v799 = vsub.f32 %v357, %v735
  %v800 = vsub.f32 %v360, %v736
  %v801 = vsub.f32 %v365, %v737
  %v802 = vsub.f32 %v368, %v738
  %v803 = vsub.f32 %v373, %v739
  %v804 = vsub.f32 %v376, %v740
  %v805 = vsub.f32 %v381, %v741
  %v806 = vsub.f32 %v384, %v742
  %v807 = vsub.f32 %v389, %v743
  %v808 = vsub.f32 %v392, %v744
  %v809 = vsub.f32 %v397, %v745
  %v810 = vsub.f32 %v400, %v746
  %v811 = vsub.f32 %v405, %v747
  %v812 = vsub.f32 %v408, %v748
  %v813 = vsub.f32 %v413, %v749
  %v814 = vsub.f32 %v416, %v750
  %v815 = vsub.f32 %v421, %v751
  %v816 = vsub.f32 %v424, %v752
  %v817 = vsub.f32 %v429, %v753
  %v818 = vsub.f32 %v432, %v754
  %v819 = vsub.f32 %v437, %v755
  %v820 = vsub.f32 %v440, %v756
  %v821 = vsub.f32 %v445, %v757
  %v822 = vsub.f32 %v448, %v758
  %v823 = vsub.f32 %v453, %v759
  %v824 = vsub.f32 %v456, %v760
  %v825 = vsub.f32 %v461, %v761
  %v826 = vsub.f32 %v464, %v762
  %v827 = vsub.f32 %v469, %v763
  %v828 = vsub.f32 %v472, %v764
  %v829 = vsub.f32 %v477, %v765
  %v830 = vsub.f32 %v480, %v766
  %v831 = vsub.f32 %v485, %v767
  %v832 = vsub.f32 %v488, %v768
  %v833 = vsub.f32 %v493, %v769
  %v834 = vsub.f32 %v496, %v770
  %v835 = vsub.f32 %v501, %v771
  %v836 = vsub.f32 %v504, %v772
  %v837 = vsub.f32 %v509, %v773
  %v838 = vsub.f32 %v512, %v774
  %v839 = vmul.f32 %v775, %v775
  %v840 = vmul.f32 %v776, %v776
  %v841 = vmul.f32 %v777, %v777
  %v842 = vmul.f32 %v778, %v778
  %v843 = vmul.f32 %v779, %v779
  %v844 = vmul.f32 %v780, %v780
  %v845 = vmul.f32 %v781, %v781
  %v846 = vmul.f32 %v782, %v782
  %v847 = vmul.f32 %v783, %v783
  %v848 = vmul.f32 %v784, %v784
  %v849 = vmul.f32 %v785, %v785
  %v850 = vmul.f32 %v786, %v786
  %v851 = vmul.f32 %v787, %v787
  %v852 = vmul.f32 %v788, %v788
  %v853 = vmul.f32 %v789, %v789
  %v854 = vmul.f32 %v790, %v790
  %v855 = vmul.f32 %v791, %v791
  %v856 = vmul.f32 %v792, %v792
  %v857 = vmul.f32 %v793, %v793
  %v858 = vmul.f32 %v794, %v794
  %v859 = vmul.f32 %v795, %v795
  %v860 = vmul.f32 %v796, %v796
  %v861 = vmul.f32 %v797, %v797
  %v862 = vmul.f32 %v798, %v798
  %v863 = vmul.f32 %v799, %v799
  %v864 = vmul.f32 %v800, %v800
  %v865 = vmul.f32 %v801, %v801
  %v866 = vmul.f32 %v802, %v802
  %v867 = vmul.f32 %v803, %v803
  %v868 = vmul.f32 %v804, %v804
  %v869 = vmul.f32 %v805, %v805
  %v870 = vmul.f32 %v806, %v806
  %v871 = vmul.f32 %v807, %v807
  %v872 = vmul.f32 %v808, %v808
  %v873 = vmul.f32 %v809, %v809
  %v874 = vmul.f32 %v810, %v810
  %v875 = vmul.f32 %v811, %v811
  %v876 = vmul.f32 %v812, %v812
  %v877 = vmul.f32 %v813, %v813
  %v878 = vmul.f32 %v814, %v814
  %v879 = vmul.f32 %v815, %v815
  %v880 = vmul.f32 %v816, %v816
  %v881 = vmul.f32 %v817, %v817
  %v882 = vmul.f32 %v818, %v818
  %v883 = vmul.f32 %v819, %v819
  %v884 = vmul.f32 %v820, %v820
  %v885 = vmul.f32 %v821, %v821
  %v886 = vmul.f32 %v822, %v822
  %v887 = vmul.f32 %v823, %v823
  %v888 = vmul.f32 %v824, %v824
  %v889 = vmul.f32 %v825, %v825
  %v890 = vmul.f32 %v826, %v826
  %v891 = vmul.f32 %v827, %v827
  %v892 = vmul.f32 %v828, %v828
  %v893 = vmul.f32 %v829, %v829
  %v894 = vmul.f32 %v830, %v830
  %v895 = vmul.f32 %v831, %v831
  %v896 = vmul.f32 %v832, %v832
  %v897 = vmul.f32 %v833, %v833
  %v898 = vmul.f32 %v834, %v834
  %v899 = vmul.f32 %v835, %v835
  %v900 = vmul.f32 %v836, %v836
  %v901 = vmul.f32 %v837, %v837
  %v902 = vmul.f32 %v838, %v838
  %v903 = vsel %vm517, %v839, 0.0
  %904 = vadd.xlane.f32.xlu0 %v903
  %v905 = vpop.xlane.xlu0 %904
  %v906 = vsel %vm517, %v840, 0.0
  %907 = vadd.xlane.f32.xlu0 %v906
  %v908 = vpop.xlane.xlu0 %907
  %v909 = vsel %vm517, %v841, 0.0
  %910 = vadd.xlane.f32.xlu0 %v909
  %v911 = vpop.xlane.xlu0 %910
  %v912 = vsel %vm517, %v842, 0.0
  %913 = vadd.xlane.f32.xlu0 %v912
  %v914 = vpop.xlane.xlu0 %913
  %v915 = vsel %vm517, %v843, 0.0
  %916 = vadd.xlane.f32.xlu0 %v915
  %v917 = vpop.xlane.xlu0 %916
  %v918 = vsel %vm517, %v844, 0.0
  %919 = vadd.xlane.f32.xlu0 %v918
  %v920 = vpop.xlane.xlu0 %919
  %v921 = vsel %vm517, %v845, 0.0
  %922 = vadd.xlane.f32.xlu0 %v921
  %v923 = vpop.xlane.xlu0 %922
  %v924 = vsel %vm517, %v846, 0.0
  %925 = vadd.xlane.f32.xlu0 %v924
  %v926 = vpop.xlane.xlu0 %925
  %v927 = vsel %vm517, %v847, 0.0
  %928 = vadd.xlane.f32.xlu0 %v927
  %v929 = vpop.xlane.xlu0 %928
  %v930 = vsel %vm517, %v848, 0.0
  %931 = vadd.xlane.f32.xlu0 %v930
  %v932 = vpop.xlane.xlu0 %931
  %v933 = vsel %vm517, %v849, 0.0
  %934 = vadd.xlane.f32.xlu0 %v933
  %v935 = vpop.xlane.xlu0 %934
  %v936 = vsel %vm517, %v850, 0.0
  %937 = vadd.xlane.f32.xlu0 %v936
  %v938 = vpop.xlane.xlu0 %937
  %v939 = vsel %vm517, %v851, 0.0
  %940 = vadd.xlane.f32.xlu0 %v939
  %v941 = vpop.xlane.xlu0 %940
  %v942 = vsel %vm517, %v852, 0.0
  %943 = vadd.xlane.f32.xlu0 %v942
  %v944 = vpop.xlane.xlu0 %943
  %v945 = vsel %vm517, %v853, 0.0
  %946 = vadd.xlane.f32.xlu0 %v945
  %v947 = vpop.xlane.xlu0 %946
  %v948 = vsel %vm517, %v854, 0.0
  %949 = vadd.xlane.f32.xlu0 %v948
  %v950 = vpop.xlane.xlu0 %949
  %v951 = vsel %vm517, %v855, 0.0
  %952 = vadd.xlane.f32.xlu0 %v951
  %v953 = vpop.xlane.xlu0 %952
  %v954 = vsel %vm517, %v856, 0.0
  %955 = vadd.xlane.f32.xlu0 %v954
  %v956 = vpop.xlane.xlu0 %955
  %v957 = vsel %vm517, %v857, 0.0
  %958 = vadd.xlane.f32.xlu0 %v957
  %v959 = vpop.xlane.xlu0 %958
  %v960 = vsel %vm517, %v858, 0.0
  %961 = vadd.xlane.f32.xlu0 %v960
  %v962 = vpop.xlane.xlu0 %961
  %v963 = vsel %vm517, %v859, 0.0
  %964 = vadd.xlane.f32.xlu0 %v963
  %v965 = vpop.xlane.xlu0 %964
  %v966 = vsel %vm517, %v860, 0.0
  %967 = vadd.xlane.f32.xlu0 %v966
  %v968 = vpop.xlane.xlu0 %967
  %v969 = vsel %vm517, %v861, 0.0
  %970 = vadd.xlane.f32.xlu0 %v969
  %v971 = vpop.xlane.xlu0 %970
  %v972 = vsel %vm517, %v862, 0.0
  %973 = vadd.xlane.f32.xlu0 %v972
  %v974 = vpop.xlane.xlu0 %973
  %v975 = vsel %vm517, %v863, 0.0
  %976 = vadd.xlane.f32.xlu0 %v975
  %v977 = vpop.xlane.xlu0 %976
  %v978 = vsel %vm517, %v864, 0.0
  %979 = vadd.xlane.f32.xlu0 %v978
  %v980 = vpop.xlane.xlu0 %979
  %v981 = vsel %vm517, %v865, 0.0
  %982 = vadd.xlane.f32.xlu0 %v981
  %v983 = vpop.xlane.xlu0 %982
  %v984 = vsel %vm517, %v866, 0.0
  %985 = vadd.xlane.f32.xlu0 %v984
  %v986 = vpop.xlane.xlu0 %985
  %v987 = vsel %vm517, %v867, 0.0
  %988 = vadd.xlane.f32.xlu0 %v987
  %v989 = vpop.xlane.xlu0 %988
  %v990 = vsel %vm517, %v868, 0.0
  %991 = vadd.xlane.f32.xlu0 %v990
  %v992 = vpop.xlane.xlu0 %991
  %v993 = vsel %vm517, %v869, 0.0
  %994 = vadd.xlane.f32.xlu0 %v993
  %v995 = vpop.xlane.xlu0 %994
  %v996 = vsel %vm517, %v870, 0.0
  %997 = vadd.xlane.f32.xlu0 %v996
  %v998 = vpop.xlane.xlu0 %997
  %v999 = vsel %vm517, %v871, 0.0
  %1000 = vadd.xlane.f32.xlu0 %v999
  %v1001 = vpop.xlane.xlu0 %1000
  %v1002 = vsel %vm517, %v872, 0.0
  %1003 = vadd.xlane.f32.xlu0 %v1002
  %v1004 = vpop.xlane.xlu0 %1003
  %v1005 = vsel %vm517, %v873, 0.0
  %1006 = vadd.xlane.f32.xlu0 %v1005
  %v1007 = vpop.xlane.xlu0 %1006
  %v1008 = vsel %vm517, %v874, 0.0
  %1009 = vadd.xlane.f32.xlu0 %v1008
  %v1010 = vpop.xlane.xlu0 %1009
  %v1011 = vsel %vm517, %v875, 0.0
  %1012 = vadd.xlane.f32.xlu0 %v1011
  %v1013 = vpop.xlane.xlu0 %1012
  %v1014 = vsel %vm517, %v876, 0.0
  %1015 = vadd.xlane.f32.xlu0 %v1014
  %v1016 = vpop.xlane.xlu0 %1015
  %v1017 = vsel %vm517, %v877, 0.0
  %1018 = vadd.xlane.f32.xlu0 %v1017
  %v1019 = vpop.xlane.xlu0 %1018
  %v1020 = vsel %vm517, %v878, 0.0
  %1021 = vadd.xlane.f32.xlu0 %v1020
  %v1022 = vpop.xlane.xlu0 %1021
  %v1023 = vsel %vm517, %v879, 0.0
  %1024 = vadd.xlane.f32.xlu0 %v1023
  %v1025 = vpop.xlane.xlu0 %1024
  %v1026 = vsel %vm517, %v880, 0.0
  %1027 = vadd.xlane.f32.xlu0 %v1026
  %v1028 = vpop.xlane.xlu0 %1027
  %v1029 = vsel %vm517, %v881, 0.0
  %1030 = vadd.xlane.f32.xlu0 %v1029
  %v1031 = vpop.xlane.xlu0 %1030
  %v1032 = vsel %vm517, %v882, 0.0
  %1033 = vadd.xlane.f32.xlu0 %v1032
  %v1034 = vpop.xlane.xlu0 %1033
  %v1035 = vsel %vm517, %v883, 0.0
  %1036 = vadd.xlane.f32.xlu0 %v1035
  %v1037 = vpop.xlane.xlu0 %1036
  %v1038 = vsel %vm517, %v884, 0.0
  %1039 = vadd.xlane.f32.xlu0 %v1038
  %v1040 = vpop.xlane.xlu0 %1039
  %v1041 = vsel %vm517, %v885, 0.0
  %1042 = vadd.xlane.f32.xlu0 %v1041
  %v1043 = vpop.xlane.xlu0 %1042
  %v1044 = vsel %vm517, %v886, 0.0
  %1045 = vadd.xlane.f32.xlu0 %v1044
  %v1046 = vpop.xlane.xlu0 %1045
  %v1047 = vsel %vm517, %v887, 0.0
  %1048 = vadd.xlane.f32.xlu0 %v1047
  %v1049 = vpop.xlane.xlu0 %1048
  %v1050 = vsel %vm517, %v888, 0.0
  %1051 = vadd.xlane.f32.xlu0 %v1050
  %v1052 = vpop.xlane.xlu0 %1051
  %v1053 = vsel %vm517, %v889, 0.0
  %1054 = vadd.xlane.f32.xlu0 %v1053
  %v1055 = vpop.xlane.xlu0 %1054
  %v1056 = vsel %vm517, %v890, 0.0
  %1057 = vadd.xlane.f32.xlu0 %v1056
  %v1058 = vpop.xlane.xlu0 %1057
  %v1059 = vsel %vm517, %v891, 0.0
  %1060 = vadd.xlane.f32.xlu0 %v1059
  %v1061 = vpop.xlane.xlu0 %1060
  %v1062 = vsel %vm517, %v892, 0.0
  %1063 = vadd.xlane.f32.xlu0 %v1062
  %v1064 = vpop.xlane.xlu0 %1063
  %v1065 = vsel %vm517, %v893, 0.0
  %1066 = vadd.xlane.f32.xlu0 %v1065
  %v1067 = vpop.xlane.xlu0 %1066
  %v1068 = vsel %vm517, %v894, 0.0
  %1069 = vadd.xlane.f32.xlu0 %v1068
  %v1070 = vpop.xlane.xlu0 %1069
  %v1071 = vsel %vm517, %v895, 0.0
  %1072 = vadd.xlane.f32.xlu0 %v1071
  %v1073 = vpop.xlane.xlu0 %1072
  %v1074 = vsel %vm517, %v896, 0.0
  %1075 = vadd.xlane.f32.xlu0 %v1074
  %v1076 = vpop.xlane.xlu0 %1075
  %v1077 = vsel %vm517, %v897, 0.0
  %1078 = vadd.xlane.f32.xlu0 %v1077
  %v1079 = vpop.xlane.xlu0 %1078
  %v1080 = vsel %vm517, %v898, 0.0
  %1081 = vadd.xlane.f32.xlu0 %v1080
  %v1082 = vpop.xlane.xlu0 %1081
  %v1083 = vsel %vm517, %v899, 0.0
  %1084 = vadd.xlane.f32.xlu0 %v1083
  %v1085 = vpop.xlane.xlu0 %1084
  %v1086 = vsel %vm517, %v900, 0.0
  %1087 = vadd.xlane.f32.xlu0 %v1086
  %v1088 = vpop.xlane.xlu0 %1087
  %v1089 = vsel %vm517, %v901, 0.0
  %1090 = vadd.xlane.f32.xlu0 %v1089
  %v1091 = vpop.xlane.xlu0 %1090
  %v1092 = vsel %vm517, %v902, 0.0
  %1093 = vadd.xlane.f32.xlu0 %v1092
  %v1094 = vpop.xlane.xlu0 %1093
  %v1095 = vmul.f32 %v905, %v710
  %v1096 = vmul.f32 %v908, %v710
  %v1097 = vmul.f32 %v911, %v710
  %v1098 = vmul.f32 %v914, %v710
  %v1099 = vmul.f32 %v917, %v710
  %v1100 = vmul.f32 %v920, %v710
  %v1101 = vmul.f32 %v923, %v710
  %v1102 = vmul.f32 %v926, %v710
  %v1103 = vmul.f32 %v929, %v710
  %v1104 = vmul.f32 %v932, %v710
  %v1105 = vmul.f32 %v935, %v710
  %v1106 = vmul.f32 %v938, %v710
  %v1107 = vmul.f32 %v941, %v710
  %v1108 = vmul.f32 %v944, %v710
  %v1109 = vmul.f32 %v947, %v710
  %v1110 = vmul.f32 %v950, %v710
  %v1111 = vmul.f32 %v953, %v710
  %v1112 = vmul.f32 %v956, %v710
  %v1113 = vmul.f32 %v959, %v710
  %v1114 = vmul.f32 %v962, %v710
  %v1115 = vmul.f32 %v965, %v710
  %v1116 = vmul.f32 %v968, %v710
  %v1117 = vmul.f32 %v971, %v710
  %v1118 = vmul.f32 %v974, %v710
  %v1119 = vmul.f32 %v977, %v710
  %v1120 = vmul.f32 %v980, %v710
  %v1121 = vmul.f32 %v983, %v710
  %v1122 = vmul.f32 %v986, %v710
  %v1123 = vmul.f32 %v989, %v710
  %v1124 = vmul.f32 %v992, %v710
  %v1125 = vmul.f32 %v995, %v710
  %v1126 = vmul.f32 %v998, %v710
  %v1127 = vmul.f32 %v1001, %v710
  %v1128 = vmul.f32 %v1004, %v710
  %v1129 = vmul.f32 %v1007, %v710
  %v1130 = vmul.f32 %v1010, %v710
  %v1131 = vmul.f32 %v1013, %v710
  %v1132 = vmul.f32 %v1016, %v710
  %v1133 = vmul.f32 %v1019, %v710
  %v1134 = vmul.f32 %v1022, %v710
  %v1135 = vmul.f32 %v1025, %v710
  %v1136 = vmul.f32 %v1028, %v710
  %v1137 = vmul.f32 %v1031, %v710
  %v1138 = vmul.f32 %v1034, %v710
  %v1139 = vmul.f32 %v1037, %v710
  %v1140 = vmul.f32 %v1040, %v710
  %v1141 = vmul.f32 %v1043, %v710
  %v1142 = vmul.f32 %v1046, %v710
  %v1143 = vmul.f32 %v1049, %v710
  %v1144 = vmul.f32 %v1052, %v710
  %v1145 = vmul.f32 %v1055, %v710
  %v1146 = vmul.f32 %v1058, %v710
  %v1147 = vmul.f32 %v1061, %v710
  %v1148 = vmul.f32 %v1064, %v710
  %v1149 = vmul.f32 %v1067, %v710
  %v1150 = vmul.f32 %v1070, %v710
  %v1151 = vmul.f32 %v1073, %v710
  %v1152 = vmul.f32 %v1076, %v710
  %v1153 = vmul.f32 %v1079, %v710
  %v1154 = vmul.f32 %v1082, %v710
  %v1155 = vmul.f32 %v1085, %v710
  %v1156 = vmul.f32 %v1088, %v710
  %v1157 = vmul.f32 %v1091, %v710
  %v1158 = vmul.f32 %v1094, %v710
  %v1159 = vadd.f32 %v1095, 1e-05
  %v1160 = vadd.f32 %v1096, 1e-05
  %v1161 = vadd.f32 %v1097, 1e-05
  %v1162 = vadd.f32 %v1098, 1e-05
  %v1163 = vadd.f32 %v1099, 1e-05
  %v1164 = vadd.f32 %v1100, 1e-05
  %v1165 = vadd.f32 %v1101, 1e-05
  %v1166 = vadd.f32 %v1102, 1e-05
  %v1167 = vadd.f32 %v1103, 1e-05
  %v1168 = vadd.f32 %v1104, 1e-05
  %v1169 = vadd.f32 %v1105, 1e-05
  %v1170 = vadd.f32 %v1106, 1e-05
  %v1171 = vadd.f32 %v1107, 1e-05
  %v1172 = vadd.f32 %v1108, 1e-05
  %v1173 = vadd.f32 %v1109, 1e-05
  %v1174 = vadd.f32 %v1110, 1e-05
  %v1175 = vadd.f32 %v1111, 1e-05
  %v1176 = vadd.f32 %v1112, 1e-05
  %v1177 = vadd.f32 %v1113, 1e-05
  %v1178 = vadd.f32 %v1114, 1e-05
  %v1179 = vadd.f32 %v1115, 1e-05
  %v1180 = vadd.f32 %v1116, 1e-05
  %v1181 = vadd.f32 %v1117, 1e-05
  %v1182 = vadd.f32 %v1118, 1e-05
  %v1183 = vadd.f32 %v1119, 1e-05
  %v1184 = vadd.f32 %v1120, 1e-05
  %v1185 = vadd.f32 %v1121, 1e-05
  %v1186 = vadd.f32 %v1122, 1e-05
  %v1187 = vadd.f32 %v1123, 1e-05
  %v1188 = vadd.f32 %v1124, 1e-05
  %v1189 = vadd.f32 %v1125, 1e-05
  %v1190 = vadd.f32 %v1126, 1e-05
  %v1191 = vadd.f32 %v1127, 1e-05
  %v1192 = vadd.f32 %v1128, 1e-05
  %v1193 = vadd.f32 %v1129, 1e-05
  %v1194 = vadd.f32 %v1130, 1e-05
  %v1195 = vadd.f32 %v1131, 1e-05
  %v1196 = vadd.f32 %v1132, 1e-05
  %v1197 = vadd.f32 %v1133, 1e-05
  %v1198 = vadd.f32 %v1134, 1e-05
  %v1199 = vadd.f32 %v1135, 1e-05
  %v1200 = vadd.f32 %v1136, 1e-05
  %v1201 = vadd.f32 %v1137, 1e-05
  %v1202 = vadd.f32 %v1138, 1e-05
  %v1203 = vadd.f32 %v1139, 1e-05
  %v1204 = vadd.f32 %v1140, 1e-05
  %v1205 = vadd.f32 %v1141, 1e-05
  %v1206 = vadd.f32 %v1142, 1e-05
  %v1207 = vadd.f32 %v1143, 1e-05
  %v1208 = vadd.f32 %v1144, 1e-05
  %v1209 = vadd.f32 %v1145, 1e-05
  %v1210 = vadd.f32 %v1146, 1e-05
  %v1211 = vadd.f32 %v1147, 1e-05
  %v1212 = vadd.f32 %v1148, 1e-05
  %v1213 = vadd.f32 %v1149, 1e-05
  %v1214 = vadd.f32 %v1150, 1e-05
  %v1215 = vadd.f32 %v1151, 1e-05
  %v1216 = vadd.f32 %v1152, 1e-05
  %v1217 = vadd.f32 %v1153, 1e-05
  %v1218 = vadd.f32 %v1154, 1e-05
  %v1219 = vadd.f32 %v1155, 1e-05
  %v1220 = vadd.f32 %v1156, 1e-05
  %v1221 = vadd.f32 %v1157, 1e-05
  %v1222 = vadd.f32 %v1158, 1e-05
  %v1223 = vrsqrt.pop %v1159
  %v1224 = vrsqrt.pop %v1160
  %v1225 = vrsqrt.pop %v1161
  %v1226 = vrsqrt.pop %v1162
  %v1227 = vrsqrt.pop %v1163
  %v1228 = vrsqrt.pop %v1164
  %v1229 = vrsqrt.pop %v1165
  %v1230 = vrsqrt.pop %v1166
  %v1231 = vrsqrt.pop %v1167
  %v1232 = vrsqrt.pop %v1168
  %v1233 = vrsqrt.pop %v1169
  %v1234 = vrsqrt.pop %v1170
  %v1235 = vrsqrt.pop %v1171
  %v1236 = vrsqrt.pop %v1172
  %v1237 = vrsqrt.pop %v1173
  %v1238 = vrsqrt.pop %v1174
  %v1239 = vrsqrt.pop %v1175
  %v1240 = vrsqrt.pop %v1176
  %v1241 = vrsqrt.pop %v1177
  %v1242 = vrsqrt.pop %v1178
  %v1243 = vrsqrt.pop %v1179
  %v1244 = vrsqrt.pop %v1180
  %v1245 = vrsqrt.pop %v1181
  %v1246 = vrsqrt.pop %v1182
  %v1247 = vrsqrt.pop %v1183
  %v1248 = vrsqrt.pop %v1184
  %v1249 = vrsqrt.pop %v1185
  %v1250 = vrsqrt.pop %v1186
  %v1251 = vrsqrt.pop %v1187
  %v1252 = vrsqrt.pop %v1188
  %v1253 = vrsqrt.pop %v1189
  %v1254 = vrsqrt.pop %v1190
  %v1255 = vrsqrt.pop %v1191
  %v1256 = vrsqrt.pop %v1192
  %v1257 = vrsqrt.pop %v1193
  %v1258 = vrsqrt.pop %v1194
  %v1259 = vrsqrt.pop %v1195
  %v1260 = vrsqrt.pop %v1196
  %v1261 = vrsqrt.pop %v1197
  %v1262 = vrsqrt.pop %v1198
  %v1263 = vrsqrt.pop %v1199
  %v1264 = vrsqrt.pop %v1200
  %v1265 = vrsqrt.pop %v1201
  %v1266 = vrsqrt.pop %v1202
  %v1267 = vrsqrt.pop %v1203
  %v1268 = vrsqrt.pop %v1204
  %v1269 = vrsqrt.pop %v1205
  %v1270 = vrsqrt.pop %v1206
  %v1271 = vrsqrt.pop %v1207
  %v1272 = vrsqrt.pop %v1208
  %v1273 = vrsqrt.pop %v1209
  %v1274 = vrsqrt.pop %v1210
  %v1275 = vrsqrt.pop %v1211
  %v1276 = vrsqrt.pop %v1212
  %v1277 = vrsqrt.pop %v1213
  %v1278 = vrsqrt.pop %v1214
  %v1279 = vrsqrt.pop %v1215
  %v1280 = vrsqrt.pop %v1216
  %v1281 = vrsqrt.pop %v1217
  %v1282 = vrsqrt.pop %v1218
  %v1283 = vrsqrt.pop %v1219
  %v1284 = vrsqrt.pop %v1220
  %v1285 = vrsqrt.pop %v1221
  %v1286 = vrsqrt.pop %v1222
  %v1287 = vmul.f32 %v775, %v1223
  %v1288 = vmul.f32 %v776, %v1224
  %v1289 = vmul.f32 %v777, %v1225
  %v1290 = vmul.f32 %v778, %v1226
  %v1291 = vmul.f32 %v779, %v1227
  %v1292 = vmul.f32 %v780, %v1228
  %v1293 = vmul.f32 %v781, %v1229
  %v1294 = vmul.f32 %v782, %v1230
  %v1295 = vmul.f32 %v783, %v1231
  %v1296 = vmul.f32 %v784, %v1232
  %v1297 = vmul.f32 %v785, %v1233
  %v1298 = vmul.f32 %v786, %v1234
  %v1299 = vmul.f32 %v787, %v1235
  %v1300 = vmul.f32 %v788, %v1236
  %v1301 = vmul.f32 %v789, %v1237
  %v1302 = vmul.f32 %v790, %v1238
  %v1303 = vmul.f32 %v791, %v1239
  %v1304 = vmul.f32 %v792, %v1240
  %v1305 = vmul.f32 %v793, %v1241
  %v1306 = vmul.f32 %v794, %v1242
  %v1307 = vmul.f32 %v795, %v1243
  %v1308 = vmul.f32 %v796, %v1244
  %v1309 = vmul.f32 %v797, %v1245
  %v1310 = vmul.f32 %v798, %v1246
  %v1311 = vmul.f32 %v799, %v1247
  %v1312 = vmul.f32 %v800, %v1248
  %v1313 = vmul.f32 %v801, %v1249
  %v1314 = vmul.f32 %v802, %v1250
  %v1315 = vmul.f32 %v803, %v1251
  %v1316 = vmul.f32 %v804, %v1252
  %v1317 = vmul.f32 %v805, %v1253
  %v1318 = vmul.f32 %v806, %v1254
  %v1319 = vmul.f32 %v807, %v1255
  %v1320 = vmul.f32 %v808, %v1256
  %v1321 = vmul.f32 %v809, %v1257
  %v1322 = vmul.f32 %v810, %v1258
  %v1323 = vmul.f32 %v811, %v1259
  %v1324 = vmul.f32 %v812, %v1260
  %v1325 = vmul.f32 %v813, %v1261
  %v1326 = vmul.f32 %v814, %v1262
  %v1327 = vmul.f32 %v815, %v1263
  %v1328 = vmul.f32 %v816, %v1264
  %v1329 = vmul.f32 %v817, %v1265
  %v1330 = vmul.f32 %v818, %v1266
  %v1331 = vmul.f32 %v819, %v1267
  %v1332 = vmul.f32 %v820, %v1268
  %v1333 = vmul.f32 %v821, %v1269
  %v1334 = vmul.f32 %v822, %v1270
  %v1335 = vmul.f32 %v823, %v1271
  %v1336 = vmul.f32 %v824, %v1272
  %v1337 = vmul.f32 %v825, %v1273
  %v1338 = vmul.f32 %v826, %v1274
  %v1339 = vmul.f32 %v827, %v1275
  %v1340 = vmul.f32 %v828, %v1276
  %v1341 = vmul.f32 %v829, %v1277
  %v1342 = vmul.f32 %v830, %v1278
  %v1343 = vmul.f32 %v831, %v1279
  %v1344 = vmul.f32 %v832, %v1280
  %v1345 = vmul.f32 %v833, %v1281
  %v1346 = vmul.f32 %v834, %v1282
  %v1347 = vmul.f32 %v835, %v1283
  %v1348 = vmul.f32 %v836, %v1284
  %v1349 = vmul.f32 %v837, %v1285
  %v1350 = vmul.f32 %v838, %v1286
  %v1352 = vlaneseq
  %v1353 = vshrl.u32 %v1352, 7
  %v1354 = vsub.s32 0, %v1353
  %v1355 = vrot.slane %v515, %v1354
  %v1357 = vmul.f32 %v1287, %v1355
  %v1358 = vmul.f32 %v1288, %v1355
  %v1359 = vmul.f32 %v1289, %v1355
  %v1360 = vmul.f32 %v1290, %v1355
  %v1361 = vmul.f32 %v1291, %v1355
  %v1362 = vmul.f32 %v1292, %v1355
  %v1363 = vmul.f32 %v1293, %v1355
  %v1364 = vmul.f32 %v1294, %v1355
  %v1365 = vmul.f32 %v1295, %v1355
  %v1366 = vmul.f32 %v1296, %v1355
  %v1367 = vmul.f32 %v1297, %v1355
  %v1368 = vmul.f32 %v1298, %v1355
  %v1369 = vmul.f32 %v1299, %v1355
  %v1370 = vmul.f32 %v1300, %v1355
  %v1371 = vmul.f32 %v1301, %v1355
  %v1372 = vmul.f32 %v1302, %v1355
  %v1373 = vmul.f32 %v1303, %v1355
  %v1374 = vmul.f32 %v1304, %v1355
  %v1375 = vmul.f32 %v1305, %v1355
  %v1376 = vmul.f32 %v1306, %v1355
  %v1377 = vmul.f32 %v1307, %v1355
  %v1378 = vmul.f32 %v1308, %v1355
  %v1379 = vmul.f32 %v1309, %v1355
  %v1380 = vmul.f32 %v1310, %v1355
  %v1381 = vmul.f32 %v1311, %v1355
  %v1382 = vmul.f32 %v1312, %v1355
  %v1383 = vmul.f32 %v1313, %v1355
  %v1384 = vmul.f32 %v1314, %v1355
  %v1385 = vmul.f32 %v1315, %v1355
  %v1386 = vmul.f32 %v1316, %v1355
  %v1387 = vmul.f32 %v1317, %v1355
  %v1388 = vmul.f32 %v1318, %v1355
  %v1389 = vmul.f32 %v1319, %v1355
  %v1390 = vmul.f32 %v1320, %v1355
  %v1391 = vmul.f32 %v1321, %v1355
  %v1392 = vmul.f32 %v1322, %v1355
  %v1393 = vmul.f32 %v1323, %v1355
  %v1394 = vmul.f32 %v1324, %v1355
  %v1395 = vmul.f32 %v1325, %v1355
  %v1396 = vmul.f32 %v1326, %v1355
  %v1397 = vmul.f32 %v1327, %v1355
  %v1398 = vmul.f32 %v1328, %v1355
  %v1399 = vmul.f32 %v1329, %v1355
  %v1400 = vmul.f32 %v1330, %v1355
  %v1401 = vmul.f32 %v1331, %v1355
  %v1402 = vmul.f32 %v1332, %v1355
  %v1403 = vmul.f32 %v1333, %v1355
  %v1404 = vmul.f32 %v1334, %v1355
  %v1405 = vmul.f32 %v1335, %v1355
  %v1406 = vmul.f32 %v1336, %v1355
  %v1407 = vmul.f32 %v1337, %v1355
  %v1408 = vmul.f32 %v1338, %v1355
  %v1409 = vmul.f32 %v1339, %v1355
  %v1410 = vmul.f32 %v1340, %v1355
  %v1411 = vmul.f32 %v1341, %v1355
  %v1412 = vmul.f32 %v1342, %v1355
  %v1413 = vmul.f32 %v1343, %v1355
  %v1414 = vmul.f32 %v1344, %v1355
  %v1415 = vmul.f32 %v1345, %v1355
  %v1416 = vmul.f32 %v1346, %v1355
  %v1417 = vmul.f32 %v1347, %v1355
  %v1418 = vmul.f32 %v1348, %v1355
  %v1419 = vmul.f32 %v1349, %v1355
  %v1420 = vmul.f32 %v1350, %v1355
  %v1422 = vlaneseq
  %v1423 = vshrl.u32 %v1422, 7
  %v1424 = vsub.s32 0, %v1423
  %v1425 = vrot.slane %v516, %v1424
  %v1427 = vadd.f32 %v1357, %v1425
  %v1428 = vadd.f32 %v1358, %v1425
  %v1429 = vadd.f32 %v1359, %v1425
  %v1430 = vadd.f32 %v1360, %v1425
  %v1431 = vadd.f32 %v1361, %v1425
  %v1432 = vadd.f32 %v1362, %v1425
  %v1433 = vadd.f32 %v1363, %v1425
  %v1434 = vadd.f32 %v1364, %v1425
  %v1435 = vadd.f32 %v1365, %v1425
  %v1436 = vadd.f32 %v1366, %v1425
  %v1437 = vadd.f32 %v1367, %v1425
  %v1438 = vadd.f32 %v1368, %v1425
  %v1439 = vadd.f32 %v1369, %v1425
  %v1440 = vadd.f32 %v1370, %v1425
  %v1441 = vadd.f32 %v1371, %v1425
  %v1442 = vadd.f32 %v1372, %v1425
  %v1443 = vadd.f32 %v1373, %v1425
  %v1444 = vadd.f32 %v1374, %v1425
  %v1445 = vadd.f32 %v1375, %v1425
  %v1446 = vadd.f32 %v1376, %v1425
  %v1447 = vadd.f32 %v1377, %v1425
  %v1448 = vadd.f32 %v1378, %v1425
  %v1449 = vadd.f32 %v1379, %v1425
  %v1450 = vadd.f32 %v1380, %v1425
  %v1451 = vadd.f32 %v1381, %v1425
  %v1452 = vadd.f32 %v1382, %v1425
  %v1453 = vadd.f32 %v1383, %v1425
  %v1454 = vadd.f32 %v1384, %v1425
  %v1455 = vadd.f32 %v1385, %v1425
  %v1456 = vadd.f32 %v1386, %v1425
  %v1457 = vadd.f32 %v1387, %v1425
  %v1458 = vadd.f32 %v1388, %v1425
  %v1459 = vadd.f32 %v1389, %v1425
  %v1460 = vadd.f32 %v1390, %v1425
  %v1461 = vadd.f32 %v1391, %v1425
  %v1462 = vadd.f32 %v1392, %v1425
  %v1463 = vadd.f32 %v1393, %v1425
  %v1464 = vadd.f32 %v1394, %v1425
  %v1465 = vadd.f32 %v1395, %v1425
  %v1466 = vadd.f32 %v1396, %v1425
  %v1467 = vadd.f32 %v1397, %v1425
  %v1468 = vadd.f32 %v1398, %v1425
  %v1469 = vadd.f32 %v1399, %v1425
  %v1470 = vadd.f32 %v1400, %v1425
  %v1471 = vadd.f32 %v1401, %v1425
  %v1472 = vadd.f32 %v1402, %v1425
  %v1473 = vadd.f32 %v1403, %v1425
  %v1474 = vadd.f32 %v1404, %v1425
  %v1475 = vadd.f32 %v1405, %v1425
  %v1476 = vadd.f32 %v1406, %v1425
  %v1477 = vadd.f32 %v1407, %v1425
  %v1478 = vadd.f32 %v1408, %v1425
  %v1479 = vadd.f32 %v1409, %v1425
  %v1480 = vadd.f32 %v1410, %v1425
  %v1481 = vadd.f32 %v1411, %v1425
  %v1482 = vadd.f32 %v1412, %v1425
  %v1483 = vadd.f32 %v1413, %v1425
  %v1484 = vadd.f32 %v1414, %v1425
  %v1485 = vadd.f32 %v1415, %v1425
  %v1486 = vadd.f32 %v1416, %v1425
  %v1487 = vadd.f32 %v1417, %v1425
  %v1488 = vadd.f32 %v1418, %v1425
  %v1489 = vadd.f32 %v1419, %v1425
  %v1490 = vadd.f32 %v1420, %v1425
  %1491 = vst.msk [vmem:[%s5] sm:$0xff] %vm517, %v1427
  %1492 = vst.msk [vmem:[%s5 + $0x8] sm:$0xff] %vm517, %v1428
  %1493 = vst.msk [vmem:[%s5 + $0x10] sm:$0xff] %vm517, %v1429
  %1494 = vst.msk [vmem:[%s5 + $0x18] sm:$0xff] %vm517, %v1430
  %1495 = vst.msk [vmem:[%s5 + $0x20] sm:$0xff] %vm517, %v1431
  %1496 = vst.msk [vmem:[%s5 + $0x28] sm:$0xff] %vm517, %v1432
  %1497 = vst.msk [vmem:[%s5 + $0x30] sm:$0xff] %vm517, %v1433
  %1498 = vst.msk [vmem:[%s5 + $0x38] sm:$0xff] %vm517, %v1434
  %1499 = vst.msk [vmem:[%s5 + $0x40] sm:$0xff] %vm517, %v1435
  %1500 = vst.msk [vmem:[%s5 + $0x48] sm:$0xff] %vm517, %v1436
  %1501 = vst.msk [vmem:[%s5 + $0x50] sm:$0xff] %vm517, %v1437
  %1502 = vst.msk [vmem:[%s5 + $0x58] sm:$0xff] %vm517, %v1438
  %1503 = vst.msk [vmem:[%s5 + $0x60] sm:$0xff] %vm517, %v1439
  %1504 = vst.msk [vmem:[%s5 + $0x68] sm:$0xff] %vm517, %v1440
  %1505 = vst.msk [vmem:[%s5 + $0x70] sm:$0xff] %vm517, %v1441
  %1506 = vst.msk [vmem:[%s5 + $0x78] sm:$0xff] %vm517, %v1442
  %1507 = vst.msk [vmem:[%s5 + $0x80] sm:$0xff] %vm517, %v1443
  %1508 = vst.msk [vmem:[%s5 + $0x88] sm:$0xff] %vm517, %v1444
  %1509 = vst.msk [vmem:[%s5 + $0x90] sm:$0xff] %vm517, %v1445
  %1510 = vst.msk [vmem:[%s5 + $0x98] sm:$0xff] %vm517, %v1446
  %1511 = vst.msk [vmem:[%s5 + $0xa0] sm:$0xff] %vm517, %v1447
  %1512 = vst.msk [vmem:[%s5 + $0xa8] sm:$0xff] %vm517, %v1448
  %1513 = vst.msk [vmem:[%s5 + $0xb0] sm:$0xff] %vm517, %v1449
  %1514 = vst.msk [vmem:[%s5 + $0xb8] sm:$0xff] %vm517, %v1450
  %1515 = vst.msk [vmem:[%s5 + $0xc0] sm:$0xff] %vm517, %v1451
  %1516 = vst.msk [vmem:[%s5 + $0xc8] sm:$0xff] %vm517, %v1452
  %1517 = vst.msk [vmem:[%s5 + $0xd0] sm:$0xff] %vm517, %v1453
  %1518 = vst.msk [vmem:[%s5 + $0xd8] sm:$0xff] %vm517, %v1454
  %1519 = vst.msk [vmem:[%s5 + $0xe0] sm:$0xff] %vm517, %v1455
  %1520 = vst.msk [vmem:[%s5 + $0xe8] sm:$0xff] %vm517, %v1456
  %1521 = vst.msk [vmem:[%s5 + $0xf0] sm:$0xff] %vm517, %v1457
  %1522 = vst.msk [vmem:[%s5 + $0xf8] sm:$0xff] %vm517, %v1458
  %1523 = vst.msk [vmem:[%s5 + $0x100] sm:$0xff] %vm517, %v1459
  %1524 = vst.msk [vmem:[%s5 + $0x108] sm:$0xff] %vm517, %v1460
  %1525 = vst.msk [vmem:[%s5 + $0x110] sm:$0xff] %vm517, %v1461
  %1526 = vst.msk [vmem:[%s5 + $0x118] sm:$0xff] %vm517, %v1462
  %1527 = vst.msk [vmem:[%s5 + $0x120] sm:$0xff] %vm517, %v1463
  %1528 = vst.msk [vmem:[%s5 + $0x128] sm:$0xff] %vm517, %v1464
  %1529 = vst.msk [vmem:[%s5 + $0x130] sm:$0xff] %vm517, %v1465
  %1530 = vst.msk [vmem:[%s5 + $0x138] sm:$0xff] %vm517, %v1466
  %1531 = vst.msk [vmem:[%s5 + $0x140] sm:$0xff] %vm517, %v1467
  %1532 = vst.msk [vmem:[%s5 + $0x148] sm:$0xff] %vm517, %v1468
  %1533 = vst.msk [vmem:[%s5 + $0x150] sm:$0xff] %vm517, %v1469
  %1534 = vst.msk [vmem:[%s5 + $0x158] sm:$0xff] %vm517, %v1470
  %1535 = vst.msk [vmem:[%s5 + $0x160] sm:$0xff] %vm517, %v1471
  %1536 = vst.msk [vmem:[%s5 + $0x168] sm:$0xff] %vm517, %v1472
  %1537 = vst.msk [vmem:[%s5 + $0x170] sm:$0xff] %vm517, %v1473
  %1538 = vst.msk [vmem:[%s5 + $0x178] sm:$0xff] %vm517, %v1474
  %1539 = vst.msk [vmem:[%s5 + $0x180] sm:$0xff] %vm517, %v1475
  %1540 = vst.msk [vmem:[%s5 + $0x188] sm:$0xff] %vm517, %v1476
  %1541 = vst.msk [vmem:[%s5 + $0x190] sm:$0xff] %vm517, %v1477
  %1542 = vst.msk [vmem:[%s5 + $0x198] sm:$0xff] %vm517, %v1478
  %1543 = vst.msk [vmem:[%s5 + $0x1a0] sm:$0xff] %vm517, %v1479
  %1544 = vst.msk [vmem:[%s5 + $0x1a8] sm:$0xff] %vm517, %v1480
  %1545 = vst.msk [vmem:[%s5 + $0x1b0] sm:$0xff] %vm517, %v1481
  %1546 = vst.msk [vmem:[%s5 + $0x1b8] sm:$0xff] %vm517, %v1482
  %1547 = vst.msk [vmem:[%s5 + $0x1c0] sm:$0xff] %vm517, %v1483
  %1548 = vst.msk [vmem:[%s5 + $0x1c8] sm:$0xff] %vm517, %v1484
  %1549 = vst.msk [vmem:[%s5 + $0x1d0] sm:$0xff] %vm517, %v1485
  %1550 = vst.msk [vmem:[%s5 + $0x1d8] sm:$0xff] %vm517, %v1486
  %1551 = vst.msk [vmem:[%s5 + $0x1e0] sm:$0xff] %vm517, %v1487
  %1552 = vst.msk [vmem:[%s5 + $0x1e8] sm:$0xff] %vm517, %v1488
  %1553 = vst.msk [vmem:[%s5 + $0x1f0] sm:$0xff] %vm517, %v1489
  %1554 = vst.msk [vmem:[%s5 + $0x1f8] sm:$0xff] %vm517, %v1490
  // Predicated region
  $region22: #{tpu_custom_call.1} parent=0 // pred_check
    _
  $region23: #{tpu_custom_call.1} parent=0 // pred_check_branch
    %1556 = sbr.rel (0) target = $region25
  $region24: #{tpu_custom_call.1} parent=0 // pred_region
    _
  $region25: #{tpu_custom_call.1} parent=0 // pred_fallthru
    _
  // Predicated region
  $region26: #{tpu_custom_call.1} parent=0 // pred_check
    _
  $region27: #{tpu_custom_call.1} parent=0 // pred_check_branch
    %1558 = sbr.rel (0) target = $region29
  $region28: #{tpu_custom_call.1} parent=0 // pred_region
    _
  $region29: #{tpu_custom_call.1} parent=0 // pred_fallthru
    _

</llo_original>
